<compile_context>
chip_gen: v6e
topology: v6e:2x2x1
jax: 0.10.0
libtpu: 0.0.40
codegen_flags: <defaults>
</compile_context>

<pallas_src>
import math

import jax
import jax.numpy as jnp
from jax import lax
from jax.experimental import pallas as pl
from jax.experimental.pallas import tpu as pltpu


# ----------------------------- model config ---------------------------------
D_MODEL = 32
N_HEAD = 4
D_K = D_MODEL // N_HEAD
BS = 2
L_Q = 8
L_K = 8   # l_K must equal l_V for the attention einsums to be consistent
L_V = 8


# ------------------------------- kernel -------------------------------------
def make_mha_kernel(n_head):
    def mha_kernel(q_ref, k_ref, v_ref, bias_ref,
                   wq_ref, wk_ref, wv_ref, wo_ref, bo_ref,
                   out_ref):
        # q_ref/k_ref/v_ref: (BS*L, D) flattened activations
        # bias_ref:          (BS, L_Q, L_K) float32 additive mask (0 / -1e20)
        # w*_ref:            (D, D) pre-transposed to [in_features, out_features]
        # bo_ref:            (1, D)
        bs, l_q, l_k = bias_ref.shape
        d = q_ref.shape[-1]
        d_k = d // n_head
        # NOTE: the module scales by 1/sqrt(d_model), NOT 1/sqrt(d_K).
        scale = 1.0 / math.sqrt(d)

        # Q/K/V projections for ALL batches at once: (BS*L, D) @ (D, D)
        Q = jnp.dot(q_ref[...], wq_ref[...], preferred_element_type=jnp.float32)
        K = jnp.dot(k_ref[...], wk_ref[...], preferred_element_type=jnp.float32)
        V = jnp.dot(v_ref[...], wv_ref[...], preferred_element_type=jnp.float32)

        bo = bo_ref[...]  # (1, d)

        # Attention core: static (batch, head) loop (tiny trip counts).
        # fc_out is folded into the head loop:
        #   out_b = sum_h ctx_{b,h} @ WoT[h*d_k:(h+1)*d_k, :] + bo
        # which avoids the per-head concat / scratch round-trip entirely.
        for b in range(bs):
            qb = Q[b * l_q:(b + 1) * l_q, :]       # (l_q, d)
            kb = K[b * l_k:(b + 1) * l_k, :]       # (l_k, d)
            vb = V[b * l_k:(b + 1) * l_k, :]       # (l_k, d)
            bias_b = bias_ref[b]                   # (l_q, l_k), head-invariant

            acc = jnp.zeros((l_q, d), jnp.float32)
            for h in range(n_head):
                qh = qb[:, h * d_k:(h + 1) * d_k]  # (l_q, d_k)
                kh = kb[:, h * d_k:(h + 1) * d_k]  # (l_k, d_k)
                vh = vb[:, h * d_k:(h + 1) * d_k]  # (l_k, d_k)

                # e = einsum('qd,kd->qk') without materializing kh.T
                e = lax.dot_general(qh, kh, (((1,), (1,)), ((), ())),
                                    preferred_element_type=jnp.float32)
                # masked_fill(Mask == 0, -1e20) happens BEFORE the scaling
                # (additive -1e20 bias is numerically equivalent in f32).
                e = (e + bias_b) * scale

                # softmax over the key axis
                m = jnp.max(e, axis=-1, keepdims=True)
                p = jnp.exp(e - m)
                inv = pl.reciprocal(jnp.sum(p, axis=-1, keepdims=True), approx=True)
                alpha = p * inv

                ctx_h = jnp.dot(alpha, vh, preferred_element_type=jnp.float32)
                # partial fc_out: ctx_h @ WoT rows for this head
                acc = acc + jnp.dot(ctx_h, wo_ref[h * d_k:(h + 1) * d_k, :],
                                    preferred_element_type=jnp.float32)

            out_ref[b * l_q:(b + 1) * l_q, :] = (acc + bo).astype(out_ref.dtype)

    return mha_kernel


# ------------------------------- wrapper -------------------------------------
def multi_head_attention(q_ipt, k_ipt, v_ipt, mask, wq, wk, wv, wo, bo):
    """q/k/v_ipt: [BS, L, D]; mask: [BS, L_Q, L_K] int32; weights [D, D] (PyTorch
    [out, in] layout); bo [D]."""
    bs, l_q, d = q_ipt.shape
    l_k = k_ipt.shape[1]
    l_v = v_ipt.shape[1]
    assert l_k == l_v, "attention einsums require l_K == l_V"

    # One-time, wrapper-side layout plumbing (outside the kernel):
    q_flat = q_ipt.reshape(bs * l_q, d)
    k_flat = k_ipt.reshape(bs * l_k, d)
    v_flat = v_ipt.reshape(bs * l_v, d)
    wq_t, wk_t, wv_t, wo_t = wq.T, wk.T, wv.T, wo.T   # [in_features, out_features]
    bo2 = bo.reshape(1, d)
    # Precompute the mask as an additive float32 bias (0 where kept, -1e20 masked).
    bias = jnp.where(mask == 0, jnp.float32(-1e20), jnp.float32(0.0))

    vmem_spec = pl.BlockSpec(memory_space=pltpu.MemorySpace.VMEM)

    out_flat = pl.pallas_call(
        make_mha_kernel(N_HEAD),
        out_shape=jax.ShapeDtypeStruct((bs * l_q, d), q_ipt.dtype),
        in_specs=[vmem_spec] * 9,   # whole arrays resident in VMEM, single step
        out_specs=vmem_spec,
    )(q_flat, k_flat, v_flat, bias, wq_t, wk_t, wv_t, wo_t, bo2)

    return out_flat.reshape(bs, l_q, d)


# ----------------------------- pure-JAX reference ----------------------------
def reference(q_ipt, k_ipt, v_ipt, mask, wq, wk, wv, wo, bo):
    bs, l_q, d = q_ipt.shape
    l_k, l_v = k_ipt.shape[1], v_ipt.shape[1]
    Q = q_ipt @ wq.T
    K = k_ipt @ wk.T
    V = v_ipt @ wv.T
    Qh = Q.reshape(bs, l_q, N_HEAD, D_K)
    Kh = K.reshape(bs, l_k, N_HEAD, D_K)
    Vh = V.reshape(bs, l_v, N_HEAD, D_K)
    e = jnp.einsum('nqhd,nkhd->nhqk', Qh, Kh)
    e = jnp.where(mask[:, None, :, :] == 0, jnp.float32(-1e20), e)
    alpha = jax.nn.softmax(e / math.sqrt(D_MODEL), axis=3)
    ctx = jnp.einsum('BNQK,BKND->BQND', alpha, Vh).reshape(bs, l_q, N_HEAD * D_K)
    return ctx @ wo.T + bo


# --------------------------------- main --------------------------------------
if __name__ == "__main__":
    key = jax.random.PRNGKey(0)
    ks = jax.random.split(key, 9)

    q_ipt = jax.random.normal(ks[0], (BS, L_Q, D_MODEL), jnp.float32)
    k_ipt = jax.random.normal(ks[1], (BS, L_K, D_MODEL), jnp.float32)
    v_ipt = jax.random.normal(ks[2], (BS, L_V, D_MODEL), jnp.float32)

    # padding-style mask, int32, broadcast over heads (layout [BS, L_Q, L_K])
    mask = (jax.random.uniform(ks[3], (BS, L_Q, L_K)) > 0.2).astype(jnp.int32)
    # ensure no fully-masked query row (so softmax stays well defined)
    mask = mask.at[:, :, 0].set(1)

    # deterministic parameter init (synthetic, Linear-style scaling); PyTorch
    # [out_features, in_features] layout.
    scale_w = 1.0 / math.sqrt(D_MODEL)
    wq = jax.random.uniform(ks[4], (D_MODEL, D_MODEL), jnp.float32, -scale_w, scale_w)
    wk = jax.random.uniform(ks[5], (D_MODEL, D_MODEL), jnp.float32, -scale_w, scale_w)
    wv = jax.random.uniform(ks[6], (D_MODEL, D_MODEL), jnp.float32, -scale_w, scale_w)
    wo = jax.random.uniform(ks[7], (D_MODEL, D_MODEL), jnp.float32, -scale_w, scale_w)
    bo = jax.random.uniform(ks[8], (D_MODEL,), jnp.float32, -scale_w, scale_w)

    out = multi_head_attention(q_ipt, k_ipt, v_ipt, mask, wq, wk, wv, wo, bo)
    out = jax.block_until_ready(out)

    ref = reference(q_ipt, k_ipt, v_ipt, mask, wq, wk, wv, wo, bo)
    assert out.shape == (BS, L_Q, D_MODEL)
    # slightly relaxed tolerance to cover the EUP approximate reciprocal in softmax
    assert jnp.allclose(out, ref, atol=1e-3, rtol=1e-3), "mismatch vs reference"

    print("KERNEL_OK")
</pallas_src>

<mosaic_0001>
module attributes {stable_mosaic.version = 11 : i64} {
  func.func @mha_kernel(%arg0: memref<16x32xf32, #tpu.memory_space<vmem>>, %arg1: memref<16x32xf32, #tpu.memory_space<vmem>>, %arg2: memref<16x32xf32, #tpu.memory_space<vmem>>, %arg3: memref<2x8x8xf32, #tpu.memory_space<vmem>>, %arg4: memref<32x32xf32, #tpu.memory_space<vmem>>, %arg5: memref<32x32xf32, #tpu.memory_space<vmem>>, %arg6: memref<32x32xf32, #tpu.memory_space<vmem>>, %arg7: memref<32x32xf32, #tpu.memory_space<vmem>>, %arg8: memref<1x32xf32, #tpu.memory_space<vmem>>, %arg9: memref<16x32xf32, #tpu.memory_space<vmem>>) attributes {dimension_semantics = [], scalar_prefetch = 0 : i64, scratch_operands = 0 : i64, tpu.core_type = #tpu.core_type<tc>} {
    %c0 = arith.constant 0 : index
    %c0_0 = arith.constant 0 : index
    %0 = vector.load %arg0[%c0, %c0_0] : memref<16x32xf32, #tpu.memory_space<vmem>>, vector<16x32xf32>
    %c0_1 = arith.constant 0 : index
    %c0_2 = arith.constant 0 : index
    %1 = vector.load %arg4[%c0_1, %c0_2] : memref<32x32xf32, #tpu.memory_space<vmem>>, vector<32x32xf32>
    %cst = arith.constant dense<0.000000e+00> : vector<16x32xf32>
    %2 = tpu.matmul %0, %1, %cst {dimension_numbers = #tpu.dot_dimension_numbers<[1], [0], [0], [1], [0, 0, 1, 1], [], []>} : vector<16x32xf32>, vector<32x32xf32>, vector<16x32xf32> -> vector<16x32xf32>
    %c0_3 = arith.constant 0 : index
    %c0_4 = arith.constant 0 : index
    %3 = vector.load %arg1[%c0_3, %c0_4] : memref<16x32xf32, #tpu.memory_space<vmem>>, vector<16x32xf32>
    %c0_5 = arith.constant 0 : index
    %c0_6 = arith.constant 0 : index
    %4 = vector.load %arg5[%c0_5, %c0_6] : memref<32x32xf32, #tpu.memory_space<vmem>>, vector<32x32xf32>
    %cst_7 = arith.constant dense<0.000000e+00> : vector<16x32xf32>
    %5 = tpu.matmul %3, %4, %cst_7 {dimension_numbers = #tpu.dot_dimension_numbers<[1], [0], [0], [1], [0, 0, 1, 1], [], []>} : vector<16x32xf32>, vector<32x32xf32>, vector<16x32xf32> -> vector<16x32xf32>
    %c0_8 = arith.constant 0 : index
    %c0_9 = arith.constant 0 : index
    %6 = vector.load %arg2[%c0_8, %c0_9] : memref<16x32xf32, #tpu.memory_space<vmem>>, vector<16x32xf32>
    %c0_10 = arith.constant 0 : index
    %c0_11 = arith.constant 0 : index
    %7 = vector.load %arg6[%c0_10, %c0_11] : memref<32x32xf32, #tpu.memory_space<vmem>>, vector<32x32xf32>
    %cst_12 = arith.constant dense<0.000000e+00> : vector<16x32xf32>
    %8 = tpu.matmul %6, %7, %cst_12 {dimension_numbers = #tpu.dot_dimension_numbers<[1], [0], [0], [1], [0, 0, 1, 1], [], []>} : vector<16x32xf32>, vector<32x32xf32>, vector<16x32xf32> -> vector<16x32xf32>
    %c0_13 = arith.constant 0 : index
    %c0_14 = arith.constant 0 : index
    %9 = vector.load %arg8[%c0_13, %c0_14] : memref<1x32xf32, #tpu.memory_space<vmem>>, vector<1x32xf32>
    %10 = vector.extract_strided_slice %2 {offsets = [0, 0], sizes = [8, 32], strides = [1, 1]} : vector<16x32xf32> to vector<8x32xf32>
    %11 = vector.extract_strided_slice %5 {offsets = [0, 0], sizes = [8, 32], strides = [1, 1]} : vector<16x32xf32> to vector<8x32xf32>
    %12 = vector.extract_strided_slice %8 {offsets = [0, 0], sizes = [8, 32], strides = [1, 1]} : vector<16x32xf32> to vector<8x32xf32>
    %c0_15 = arith.constant 0 : index
    %c0_16 = arith.constant 0 : index
    %c0_17 = arith.constant 0 : index
    %13 = vector.load %arg3[%c0_15, %c0_16, %c0_17] : memref<2x8x8xf32, #tpu.memory_space<vmem>>, vector<1x8x8xf32>
    %14 = vector.shape_cast %13 : vector<1x8x8xf32> to vector<8x8xf32>
    %cst_18 = arith.constant 0.000000e+00 : f32
    %15 = vector.broadcast %cst_18 : f32 to vector<8x32xf32>
    %16 = vector.extract_strided_slice %10 {offsets = [0, 0], sizes = [8, 8], strides = [1, 1]} : vector<8x32xf32> to vector<8x8xf32>
    %17 = vector.extract_strided_slice %11 {offsets = [0, 0], sizes = [8, 8], strides = [1, 1]} : vector<8x32xf32> to vector<8x8xf32>
    %18 = vector.extract_strided_slice %12 {offsets = [0, 0], sizes = [8, 8], strides = [1, 1]} : vector<8x32xf32> to vector<8x8xf32>
    %cst_19 = arith.constant dense<0.000000e+00> : vector<8x8xf32>
    %19 = tpu.matmul %16, %17, %cst_19 {dimension_numbers = #tpu.dot_dimension_numbers<[1], [1], [0], [0], [0, 0, 1, 0], [], []>} : vector<8x8xf32>, vector<8x8xf32>, vector<8x8xf32> -> vector<8x8xf32>
    %20 = arith.addf %19, %14 : vector<8x8xf32>
    %cst_20 = arith.constant 0.176776692 : f32
    %21 = vector.broadcast %cst_20 : f32 to vector<8x8xf32>
    %22 = arith.mulf %20, %21 : vector<8x8xf32>
    %cst_21 = arith.constant dense<0xFF800000> : vector<8xf32>
    %23 = vector.multi_reduction <maximumf>, %22, %cst_21 [1] : vector<8x8xf32> to vector<8xf32>
    %24 = vector.shape_cast %23 : vector<8xf32> to vector<8x1xf32>
    %25 = vector.broadcast %24 : vector<8x1xf32> to vector<8x8xf32>
    %26 = arith.subf %22, %25 : vector<8x8xf32>
    %27 = math.exp %26 : vector<8x8xf32>
    %cst_22 = arith.constant dense<0.000000e+00> : vector<8xf32>
    %28 = vector.multi_reduction <add>, %27, %cst_22 [1] : vector<8x8xf32> to vector<8xf32>
    %29 = vector.shape_cast %28 : vector<8xf32> to vector<8x1xf32>
    %30 = tpu.reciprocal %29 {approx = true} : vector<8x1xf32> -> vector<8x1xf32>
    %31 = vector.broadcast %30 : vector<8x1xf32> to vector<8x8xf32>
    %32 = arith.mulf %27, %31 : vector<8x8xf32>
    %cst_23 = arith.constant dense<0.000000e+00> : vector<8x8xf32>
    %33 = tpu.matmul %32, %18, %cst_23 {dimension_numbers = #tpu.dot_dimension_numbers<[1], [0], [0], [1], [0, 0, 1, 1], [], []>} : vector<8x8xf32>, vector<8x8xf32>, vector<8x8xf32> -> vector<8x8xf32>
    %c0_24 = arith.constant 0 : index
    %c0_25 = arith.constant 0 : index
    %34 = vector.load %arg7[%c0_24, %c0_25] : memref<32x32xf32, #tpu.memory_space<vmem>>, vector<8x32xf32>
    %cst_26 = arith.constant dense<0.000000e+00> : vector<8x32xf32>
    %35 = tpu.matmul %33, %34, %cst_26 {dimension_numbers = #tpu.dot_dimension_numbers<[1], [0], [0], [1], [0, 0, 1, 1], [], []>} : vector<8x8xf32>, vector<8x32xf32>, vector<8x32xf32> -> vector<8x32xf32>
    %36 = arith.addf %15, %35 : vector<8x32xf32>
    %37 = vector.extract_strided_slice %10 {offsets = [0, 8], sizes = [8, 8], strides = [1, 1]} : vector<8x32xf32> to vector<8x8xf32>
    %38 = vector.extract_strided_slice %11 {offsets = [0, 8], sizes = [8, 8], strides = [1, 1]} : vector<8x32xf32> to vector<8x8xf32>
    %39 = vector.extract_strided_slice %12 {offsets = [0, 8], sizes = [8, 8], strides = [1, 1]} : vector<8x32xf32> to vector<8x8xf32>
    %cst_27 = arith.constant dense<0.000000e+00> : vector<8x8xf32>
    %40 = tpu.matmul %37, %38, %cst_27 {dimension_numbers = #tpu.dot_dimension_numbers<[1], [1], [0], [0], [0, 0, 1, 0], [], []>} : vector<8x8xf32>, vector<8x8xf32>, vector<8x8xf32> -> vector<8x8xf32>
    %41 = arith.addf %40, %14 : vector<8x8xf32>
    %cst_28 = arith.constant 0.176776692 : f32
    %42 = vector.broadcast %cst_28 : f32 to vector<8x8xf32>
    %43 = arith.mulf %41, %42 : vector<8x8xf32>
    %cst_29 = arith.constant dense<0xFF800000> : vector<8xf32>
    %44 = vector.multi_reduction <maximumf>, %43, %cst_29 [1] : vector<8x8xf32> to vector<8xf32>
    %45 = vector.shape_cast %44 : vector<8xf32> to vector<8x1xf32>
    %46 = vector.broadcast %45 : vector<8x1xf32> to vector<8x8xf32>
    %47 = arith.subf %43, %46 : vector<8x8xf32>
    %48 = math.exp %47 : vector<8x8xf32>
    %cst_30 = arith.constant dense<0.000000e+00> : vector<8xf32>
    %49 = vector.multi_reduction <add>, %48, %cst_30 [1] : vector<8x8xf32> to vector<8xf32>
    %50 = vector.shape_cast %49 : vector<8xf32> to vector<8x1xf32>
    %51 = tpu.reciprocal %50 {approx = true} : vector<8x1xf32> -> vector<8x1xf32>
    %52 = vector.broadcast %51 : vector<8x1xf32> to vector<8x8xf32>
    %53 = arith.mulf %48, %52 : vector<8x8xf32>
    %cst_31 = arith.constant dense<0.000000e+00> : vector<8x8xf32>
    %54 = tpu.matmul %53, %39, %cst_31 {dimension_numbers = #tpu.dot_dimension_numbers<[1], [0], [0], [1], [0, 0, 1, 1], [], []>} : vector<8x8xf32>, vector<8x8xf32>, vector<8x8xf32> -> vector<8x8xf32>
    %c8 = arith.constant 8 : index
    %c0_32 = arith.constant 0 : index
    %55 = vector.load %arg7[%c8, %c0_32] : memref<32x32xf32, #tpu.memory_space<vmem>>, vector<8x32xf32>
    %cst_33 = arith.constant dense<0.000000e+00> : vector<8x32xf32>
    %56 = tpu.matmul %54, %55, %cst_33 {dimension_numbers = #tpu.dot_dimension_numbers<[1], [0], [0], [1], [0, 0, 1, 1], [], []>} : vector<8x8xf32>, vector<8x32xf32>, vector<8x32xf32> -> vector<8x32xf32>
    %57 = arith.addf %36, %56 : vector<8x32xf32>
    %58 = vector.extract_strided_slice %10 {offsets = [0, 16], sizes = [8, 8], strides = [1, 1]} : vector<8x32xf32> to vector<8x8xf32>
    %59 = vector.extract_strided_slice %11 {offsets = [0, 16], sizes = [8, 8], strides = [1, 1]} : vector<8x32xf32> to vector<8x8xf32>
    %60 = vector.extract_strided_slice %12 {offsets = [0, 16], sizes = [8, 8], strides = [1, 1]} : vector<8x32xf32> to vector<8x8xf32>
    %cst_34 = arith.constant dense<0.000000e+00> : vector<8x8xf32>
    %61 = tpu.matmul %58, %59, %cst_34 {dimension_numbers = #tpu.dot_dimension_numbers<[1], [1], [0], [0], [0, 0, 1, 0], [], []>} : vector<8x8xf32>, vector<8x8xf32>, vector<8x8xf32> -> vector<8x8xf32>
    %62 = arith.addf %61, %14 : vector<8x8xf32>
    %cst_35 = arith.constant 0.176776692 : f32
    %63 = vector.broadcast %cst_35 : f32 to vector<8x8xf32>
    %64 = arith.mulf %62, %63 : vector<8x8xf32>
    %cst_36 = arith.constant dense<0xFF800000> : vector<8xf32>
    %65 = vector.multi_reduction <maximumf>, %64, %cst_36 [1] : vector<8x8xf32> to vector<8xf32>
    %66 = vector.shape_cast %65 : vector<8xf32> to vector<8x1xf32>
    %67 = vector.broadcast %66 : vector<8x1xf32> to vector<8x8xf32>
    %68 = arith.subf %64, %67 : vector<8x8xf32>
    %69 = math.exp %68 : vector<8x8xf32>
    %cst_37 = arith.constant dense<0.000000e+00> : vector<8xf32>
    %70 = vector.multi_reduction <add>, %69, %cst_37 [1] : vector<8x8xf32> to vector<8xf32>
    %71 = vector.shape_cast %70 : vector<8xf32> to vector<8x1xf32>
    %72 = tpu.reciprocal %71 {approx = true} : vector<8x1xf32> -> vector<8x1xf32>
    %73 = vector.broadcast %72 : vector<8x1xf32> to vector<8x8xf32>
    %74 = arith.mulf %69, %73 : vector<8x8xf32>
    %cst_38 = arith.constant dense<0.000000e+00> : vector<8x8xf32>
    %75 = tpu.matmul %74, %60, %cst_38 {dimension_numbers = #tpu.dot_dimension_numbers<[1], [0], [0], [1], [0, 0, 1, 1], [], []>} : vector<8x8xf32>, vector<8x8xf32>, vector<8x8xf32> -> vector<8x8xf32>
    %c16 = arith.constant 16 : index
    %c0_39 = arith.constant 0 : index
    %76 = vector.load %arg7[%c16, %c0_39] : memref<32x32xf32, #tpu.memory_space<vmem>>, vector<8x32xf32>
    %cst_40 = arith.constant dense<0.000000e+00> : vector<8x32xf32>
    %77 = tpu.matmul %75, %76, %cst_40 {dimension_numbers = #tpu.dot_dimension_numbers<[1], [0], [0], [1], [0, 0, 1, 1], [], []>} : vector<8x8xf32>, vector<8x32xf32>, vector<8x32xf32> -> vector<8x32xf32>
    %78 = arith.addf %57, %77 : vector<8x32xf32>
    %79 = vector.extract_strided_slice %10 {offsets = [0, 24], sizes = [8, 8], strides = [1, 1]} : vector<8x32xf32> to vector<8x8xf32>
    %80 = vector.extract_strided_slice %11 {offsets = [0, 24], sizes = [8, 8], strides = [1, 1]} : vector<8x32xf32> to vector<8x8xf32>
    %81 = vector.extract_strided_slice %12 {offsets = [0, 24], sizes = [8, 8], strides = [1, 1]} : vector<8x32xf32> to vector<8x8xf32>
    %cst_41 = arith.constant dense<0.000000e+00> : vector<8x8xf32>
    %82 = tpu.matmul %79, %80, %cst_41 {dimension_numbers = #tpu.dot_dimension_numbers<[1], [1], [0], [0], [0, 0, 1, 0], [], []>} : vector<8x8xf32>, vector<8x8xf32>, vector<8x8xf32> -> vector<8x8xf32>
    %83 = arith.addf %82, %14 : vector<8x8xf32>
    %cst_42 = arith.constant 0.176776692 : f32
    %84 = vector.broadcast %cst_42 : f32 to vector<8x8xf32>
    %85 = arith.mulf %83, %84 : vector<8x8xf32>
    %cst_43 = arith.constant dense<0xFF800000> : vector<8xf32>
    %86 = vector.multi_reduction <maximumf>, %85, %cst_43 [1] : vector<8x8xf32> to vector<8xf32>
    %87 = vector.shape_cast %86 : vector<8xf32> to vector<8x1xf32>
    %88 = vector.broadcast %87 : vector<8x1xf32> to vector<8x8xf32>
    %89 = arith.subf %85, %88 : vector<8x8xf32>
    %90 = math.exp %89 : vector<8x8xf32>
    %cst_44 = arith.constant dense<0.000000e+00> : vector<8xf32>
    %91 = vector.multi_reduction <add>, %90, %cst_44 [1] : vector<8x8xf32> to vector<8xf32>
    %92 = vector.shape_cast %91 : vector<8xf32> to vector<8x1xf32>
    %93 = tpu.reciprocal %92 {approx = true} : vector<8x1xf32> -> vector<8x1xf32>
    %94 = vector.broadcast %93 : vector<8x1xf32> to vector<8x8xf32>
    %95 = arith.mulf %90, %94 : vector<8x8xf32>
    %cst_45 = arith.constant dense<0.000000e+00> : vector<8x8xf32>
    %96 = tpu.matmul %95, %81, %cst_45 {dimension_numbers = #tpu.dot_dimension_numbers<[1], [0], [0], [1], [0, 0, 1, 1], [], []>} : vector<8x8xf32>, vector<8x8xf32>, vector<8x8xf32> -> vector<8x8xf32>
    %c24 = arith.constant 24 : index
    %c0_46 = arith.constant 0 : index
    %97 = vector.load %arg7[%c24, %c0_46] : memref<32x32xf32, #tpu.memory_space<vmem>>, vector<8x32xf32>
    %cst_47 = arith.constant dense<0.000000e+00> : vector<8x32xf32>
    %98 = tpu.matmul %96, %97, %cst_47 {dimension_numbers = #tpu.dot_dimension_numbers<[1], [0], [0], [1], [0, 0, 1, 1], [], []>} : vector<8x8xf32>, vector<8x32xf32>, vector<8x32xf32> -> vector<8x32xf32>
    %99 = arith.addf %78, %98 : vector<8x32xf32>
    %100 = vector.broadcast %9 : vector<1x32xf32> to vector<8x32xf32>
    %101 = arith.addf %99, %100 : vector<8x32xf32>
    %c0_48 = arith.constant 0 : index
    %c0_49 = arith.constant 0 : index
    %102 = vector.load %arg9[%c0_48, %c0_49] : memref<16x32xf32, #tpu.memory_space<vmem>>, vector<8x32xf32>
    tpu.vector_store %arg9[%c0_48, %c0_49], %101 {strides = array<i32>} : memref<16x32xf32, #tpu.memory_space<vmem>>, vector<8x32xf32>,
    %103 = vector.extract_strided_slice %2 {offsets = [8, 0], sizes = [8, 32], strides = [1, 1]} : vector<16x32xf32> to vector<8x32xf32>
    %104 = vector.extract_strided_slice %5 {offsets = [8, 0], sizes = [8, 32], strides = [1, 1]} : vector<16x32xf32> to vector<8x32xf32>
    %105 = vector.extract_strided_slice %8 {offsets = [8, 0], sizes = [8, 32], strides = [1, 1]} : vector<16x32xf32> to vector<8x32xf32>
    %c1 = arith.constant 1 : index
    %c0_50 = arith.constant 0 : index
    %c0_51 = arith.constant 0 : index
    %106 = vector.load %arg3[%c1, %c0_50, %c0_51] : memref<2x8x8xf32, #tpu.memory_space<vmem>>, vector<1x8x8xf32>
    %107 = vector.shape_cast %106 : vector<1x8x8xf32> to vector<8x8xf32>
    %cst_52 = arith.constant 0.000000e+00 : f32
    %108 = vector.broadcast %cst_52 : f32 to vector<8x32xf32>
    %109 = vector.extract_strided_slice %103 {offsets = [0, 0], sizes = [8, 8], strides = [1, 1]} : vector<8x32xf32> to vector<8x8xf32>
    %110 = vector.extract_strided_slice %104 {offsets = [0, 0], sizes = [8, 8], strides = [1, 1]} : vector<8x32xf32> to vector<8x8xf32>
    %111 = vector.extract_strided_slice %105 {offsets = [0, 0], sizes = [8, 8], strides = [1, 1]} : vector<8x32xf32> to vector<8x8xf32>
    %cst_53 = arith.constant dense<0.000000e+00> : vector<8x8xf32>
    %112 = tpu.matmul %109, %110, %cst_53 {dimension_numbers = #tpu.dot_dimension_numbers<[1], [1], [0], [0], [0, 0, 1, 0], [], []>} : vector<8x8xf32>, vector<8x8xf32>, vector<8x8xf32> -> vector<8x8xf32>
    %113 = arith.addf %112, %107 : vector<8x8xf32>
    %cst_54 = arith.constant 0.176776692 : f32
    %114 = vector.broadcast %cst_54 : f32 to vector<8x8xf32>
    %115 = arith.mulf %113, %114 : vector<8x8xf32>
    %cst_55 = arith.constant dense<0xFF800000> : vector<8xf32>
    %116 = vector.multi_reduction <maximumf>, %115, %cst_55 [1] : vector<8x8xf32> to vector<8xf32>
    %117 = vector.shape_cast %116 : vector<8xf32> to vector<8x1xf32>
    %118 = vector.broadcast %117 : vector<8x1xf32> to vector<8x8xf32>
    %119 = arith.subf %115, %118 : vector<8x8xf32>
    %120 = math.exp %119 : vector<8x8xf32>
    %cst_56 = arith.constant dense<0.000000e+00> : vector<8xf32>
    %121 = vector.multi_reduction <add>, %120, %cst_56 [1] : vector<8x8xf32> to vector<8xf32>
    %122 = vector.shape_cast %121 : vector<8xf32> to vector<8x1xf32>
    %123 = tpu.reciprocal %122 {approx = true} : vector<8x1xf32> -> vector<8x1xf32>
    %124 = vector.broadcast %123 : vector<8x1xf32> to vector<8x8xf32>
    %125 = arith.mulf %120, %124 : vector<8x8xf32>
    %cst_57 = arith.constant dense<0.000000e+00> : vector<8x8xf32>
    %126 = tpu.matmul %125, %111, %cst_57 {dimension_numbers = #tpu.dot_dimension_numbers<[1], [0], [0], [1], [0, 0, 1, 1], [], []>} : vector<8x8xf32>, vector<8x8xf32>, vector<8x8xf32> -> vector<8x8xf32>
    %c0_58 = arith.constant 0 : index
    %c0_59 = arith.constant 0 : index
    %127 = vector.load %arg7[%c0_58, %c0_59] : memref<32x32xf32, #tpu.memory_space<vmem>>, vector<8x32xf32>
    %cst_60 = arith.constant dense<0.000000e+00> : vector<8x32xf32>
    %128 = tpu.matmul %126, %127, %cst_60 {dimension_numbers = #tpu.dot_dimension_numbers<[1], [0], [0], [1], [0, 0, 1, 1], [], []>} : vector<8x8xf32>, vector<8x32xf32>, vector<8x32xf32> -> vector<8x32xf32>
    %129 = arith.addf %108, %128 : vector<8x32xf32>
    %130 = vector.extract_strided_slice %103 {offsets = [0, 8], sizes = [8, 8], strides = [1, 1]} : vector<8x32xf32> to vector<8x8xf32>
    %131 = vector.extract_strided_slice %104 {offsets = [0, 8], sizes = [8, 8], strides = [1, 1]} : vector<8x32xf32> to vector<8x8xf32>
    %132 = vector.extract_strided_slice %105 {offsets = [0, 8], sizes = [8, 8], strides = [1, 1]} : vector<8x32xf32> to vector<8x8xf32>
    %cst_61 = arith.constant dense<0.000000e+00> : vector<8x8xf32>
    %133 = tpu.matmul %130, %131, %cst_61 {dimension_numbers = #tpu.dot_dimension_numbers<[1], [1], [0], [0], [0, 0, 1, 0], [], []>} : vector<8x8xf32>, vector<8x8xf32>, vector<8x8xf32> -> vector<8x8xf32>
    %134 = arith.addf %133, %107 : vector<8x8xf32>
    %cst_62 = arith.constant 0.176776692 : f32
    %135 = vector.broadcast %cst_62 : f32 to vector<8x8xf32>
    %136 = arith.mulf %134, %135 : vector<8x8xf32>
    %cst_63 = arith.constant dense<0xFF800000> : vector<8xf32>
    %137 = vector.multi_reduction <maximumf>, %136, %cst_63 [1] : vector<8x8xf32> to vector<8xf32>
    %138 = vector.shape_cast %137 : vector<8xf32> to vector<8x1xf32>
    %139 = vector.broadcast %138 : vector<8x1xf32> to vector<8x8xf32>
    %140 = arith.subf %136, %139 : vector<8x8xf32>
    %141 = math.exp %140 : vector<8x8xf32>
    %cst_64 = arith.constant dense<0.000000e+00> : vector<8xf32>
    %142 = vector.multi_reduction <add>, %141, %cst_64 [1] : vector<8x8xf32> to vector<8xf32>
    %143 = vector.shape_cast %142 : vector<8xf32> to vector<8x1xf32>
    %144 = tpu.reciprocal %143 {approx = true} : vector<8x1xf32> -> vector<8x1xf32>
    %145 = vector.broadcast %144 : vector<8x1xf32> to vector<8x8xf32>
    %146 = arith.mulf %141, %145 : vector<8x8xf32>
    %cst_65 = arith.constant dense<0.000000e+00> : vector<8x8xf32>
    %147 = tpu.matmul %146, %132, %cst_65 {dimension_numbers = #tpu.dot_dimension_numbers<[1], [0], [0], [1], [0, 0, 1, 1], [], []>} : vector<8x8xf32>, vector<8x8xf32>, vector<8x8xf32> -> vector<8x8xf32>
    %c8_66 = arith.constant 8 : index
    %c0_67 = arith.constant 0 : index
    %148 = vector.load %arg7[%c8_66, %c0_67] : memref<32x32xf32, #tpu.memory_space<vmem>>, vector<8x32xf32>
    %cst_68 = arith.constant dense<0.000000e+00> : vector<8x32xf32>
    %149 = tpu.matmul %147, %148, %cst_68 {dimension_numbers = #tpu.dot_dimension_numbers<[1], [0], [0], [1], [0, 0, 1, 1], [], []>} : vector<8x8xf32>, vector<8x32xf32>, vector<8x32xf32> -> vector<8x32xf32>
    %150 = arith.addf %129, %149 : vector<8x32xf32>
    %151 = vector.extract_strided_slice %103 {offsets = [0, 16], sizes = [8, 8], strides = [1, 1]} : vector<8x32xf32> to vector<8x8xf32>
    %152 = vector.extract_strided_slice %104 {offsets = [0, 16], sizes = [8, 8], strides = [1, 1]} : vector<8x32xf32> to vector<8x8xf32>
    %153 = vector.extract_strided_slice %105 {offsets = [0, 16], sizes = [8, 8], strides = [1, 1]} : vector<8x32xf32> to vector<8x8xf32>
    %cst_69 = arith.constant dense<0.000000e+00> : vector<8x8xf32>
    %154 = tpu.matmul %151, %152, %cst_69 {dimension_numbers = #tpu.dot_dimension_numbers<[1], [1], [0], [0], [0, 0, 1, 0], [], []>} : vector<8x8xf32>, vector<8x8xf32>, vector<8x8xf32> -> vector<8x8xf32>
    %155 = arith.addf %154, %107 : vector<8x8xf32>
    %cst_70 = arith.constant 0.176776692 : f32
    %156 = vector.broadcast %cst_70 : f32 to vector<8x8xf32>
    %157 = arith.mulf %155, %156 : vector<8x8xf32>
    %cst_71 = arith.constant dense<0xFF800000> : vector<8xf32>
    %158 = vector.multi_reduction <maximumf>, %157, %cst_71 [1] : vector<8x8xf32> to vector<8xf32>
    %159 = vector.shape_cast %158 : vector<8xf32> to vector<8x1xf32>
    %160 = vector.broadcast %159 : vector<8x1xf32> to vector<8x8xf32>
    %161 = arith.subf %157, %160 : vector<8x8xf32>
    %162 = math.exp %161 : vector<8x8xf32>
    %cst_72 = arith.constant dense<0.000000e+00> : vector<8xf32>
    %163 = vector.multi_reduction <add>, %162, %cst_72 [1] : vector<8x8xf32> to vector<8xf32>
    %164 = vector.shape_cast %163 : vector<8xf32> to vector<8x1xf32>
    %165 = tpu.reciprocal %164 {approx = true} : vector<8x1xf32> -> vector<8x1xf32>
    %166 = vector.broadcast %165 : vector<8x1xf32> to vector<8x8xf32>
    %167 = arith.mulf %162, %166 : vector<8x8xf32>
    %cst_73 = arith.constant dense<0.000000e+00> : vector<8x8xf32>
    %168 = tpu.matmul %167, %153, %cst_73 {dimension_numbers = #tpu.dot_dimension_numbers<[1], [0], [0], [1], [0, 0, 1, 1], [], []>} : vector<8x8xf32>, vector<8x8xf32>, vector<8x8xf32> -> vector<8x8xf32>
    %c16_74 = arith.constant 16 : index
    %c0_75 = arith.constant 0 : index
    %169 = vector.load %arg7[%c16_74, %c0_75] : memref<32x32xf32, #tpu.memory_space<vmem>>, vector<8x32xf32>
    %cst_76 = arith.constant dense<0.000000e+00> : vector<8x32xf32>
    %170 = tpu.matmul %168, %169, %cst_76 {dimension_numbers = #tpu.dot_dimension_numbers<[1], [0], [0], [1], [0, 0, 1, 1], [], []>} : vector<8x8xf32>, vector<8x32xf32>, vector<8x32xf32> -> vector<8x32xf32>
    %171 = arith.addf %150, %170 : vector<8x32xf32>
    %172 = vector.extract_strided_slice %103 {offsets = [0, 24], sizes = [8, 8], strides = [1, 1]} : vector<8x32xf32> to vector<8x8xf32>
    %173 = vector.extract_strided_slice %104 {offsets = [0, 24], sizes = [8, 8], strides = [1, 1]} : vector<8x32xf32> to vector<8x8xf32>
    %174 = vector.extract_strided_slice %105 {offsets = [0, 24], sizes = [8, 8], strides = [1, 1]} : vector<8x32xf32> to vector<8x8xf32>
    %cst_77 = arith.constant dense<0.000000e+00> : vector<8x8xf32>
    %175 = tpu.matmul %172, %173, %cst_77 {dimension_numbers = #tpu.dot_dimension_numbers<[1], [1], [0], [0], [0, 0, 1, 0], [], []>} : vector<8x8xf32>, vector<8x8xf32>, vector<8x8xf32> -> vector<8x8xf32>
    %176 = arith.addf %175, %107 : vector<8x8xf32>
    %cst_78 = arith.constant 0.176776692 : f32
    %177 = vector.broadcast %cst_78 : f32 to vector<8x8xf32>
    %178 = arith.mulf %176, %177 : vector<8x8xf32>
    %cst_79 = arith.constant dense<0xFF800000> : vector<8xf32>
    %179 = vector.multi_reduction <maximumf>, %178, %cst_79 [1] : vector<8x8xf32> to vector<8xf32>
    %180 = vector.shape_cast %179 : vector<8xf32> to vector<8x1xf32>
    %181 = vector.broadcast %180 : vector<8x1xf32> to vector<8x8xf32>
    %182 = arith.subf %178, %181 : vector<8x8xf32>
    %183 = math.exp %182 : vector<8x8xf32>
    %cst_80 = arith.constant dense<0.000000e+00> : vector<8xf32>
    %184 = vector.multi_reduction <add>, %183, %cst_80 [1] : vector<8x8xf32> to vector<8xf32>
    %185 = vector.shape_cast %184 : vector<8xf32> to vector<8x1xf32>
    %186 = tpu.reciprocal %185 {approx = true} : vector<8x1xf32> -> vector<8x1xf32>
    %187 = vector.broadcast %186 : vector<8x1xf32> to vector<8x8xf32>
    %188 = arith.mulf %183, %187 : vector<8x8xf32>
    %cst_81 = arith.constant dense<0.000000e+00> : vector<8x8xf32>
    %189 = tpu.matmul %188, %174, %cst_81 {dimension_numbers = #tpu.dot_dimension_numbers<[1], [0], [0], [1], [0, 0, 1, 1], [], []>} : vector<8x8xf32>, vector<8x8xf32>, vector<8x8xf32> -> vector<8x8xf32>
    %c24_82 = arith.constant 24 : index
    %c0_83 = arith.constant 0 : index
    %190 = vector.load %arg7[%c24_82, %c0_83] : memref<32x32xf32, #tpu.memory_space<vmem>>, vector<8x32xf32>
    %cst_84 = arith.constant dense<0.000000e+00> : vector<8x32xf32>
    %191 = tpu.matmul %189, %190, %cst_84 {dimension_numbers = #tpu.dot_dimension_numbers<[1], [0], [0], [1], [0, 0, 1, 1], [], []>} : vector<8x8xf32>, vector<8x32xf32>, vector<8x32xf32> -> vector<8x32xf32>
    %192 = arith.addf %171, %191 : vector<8x32xf32>
    %193 = vector.broadcast %9 : vector<1x32xf32> to vector<8x32xf32>
    %194 = arith.addf %192, %193 : vector<8x32xf32>
    %c8_85 = arith.constant 8 : index
    %c0_86 = arith.constant 0 : index
    %195 = vector.load %arg9[%c8_85, %c0_86] : memref<16x32xf32, #tpu.memory_space<vmem>>, vector<8x32xf32>
    tpu.vector_store %arg9[%c8_85, %c0_86], %194 {strides = array<i32>} : memref<16x32xf32, #tpu.memory_space<vmem>>, vector<8x32xf32>,
    return
  }
}

</mosaic_0001>

<llo_original>
// kernel: tpu_custom_call.1
$region0: #{tpu_custom_call.1}
  #allocation0 [shape = 'u32[]', space=smem, size = 0x4, offset = 0x4, fixed_abs, tag = 'smem constant byte address 0x4 - core index']
  #allocation1 [shape = 'u32[144,128]{1,0:T(1,128)}', space=vmem, size = 0x12000, scoped, tag = 'internal scratch']
  %s0 = inlined_call_operand.hbm [shape: f32[16,32], index: 0, kind: input, shape index: {}]
  %s1 = inlined_call_operand.hbm [shape: f32[16,32], index: 1, kind: input, shape index: {}]
  %s2 = inlined_call_operand.hbm [shape: f32[16,32], index: 2, kind: input, shape index: {}]
  %s3 = inlined_call_operand.hbm [shape: f32[2,8,8], index: 3, kind: input, shape index: {}]
  %s4 = inlined_call_operand.hbm [shape: f32[32,32], index: 4, kind: input, shape index: {}]
  %s5 = inlined_call_operand.hbm [shape: f32[32,32], index: 5, kind: input, shape index: {}]
  %s6 = inlined_call_operand.hbm [shape: f32[32,32], index: 6, kind: input, shape index: {}]
  %s7 = inlined_call_operand.hbm [shape: f32[32,32], index: 7, kind: input, shape index: {}]
  %s8 = inlined_call_operand.vmem [shape: f32[1,32], index: 8, kind: input, shape index: {}]
  %s9 = inlined_call_operand.hbm [shape: f32[16,32], index: 9, kind: output, shape index: {}]
  %s10 = sld [smem:[#allocation0]]
  $region78: #{tpu_custom_call.1} parent=0
    _
  %s12 = ssub.s32 1, %s10
  %s13 = scalar_select 0, %s12, %s10
  $region1: #{tpu_custom_call.1} parent=0
    #allocation2 [shape = 'u8[8192]{0}', space=vmem, size = 0x2000, scoped, tag = 'input window, operand 0, single buffered']
    #allocation3 [shape = 's32[1]{0}', space=sflag, size = 0x4, scoped, tag = 'scoped memory for tpu_custom_call.1']
    #allocation4 [shape = 's32[1]{0}', space=sflag, size = 0x4, scoped, tag = 'scoped memory for tpu_custom_call.1']
    #allocation5 [shape = 'u8[8192]{0}', space=vmem, size = 0x2000, scoped, tag = 'input window, operand 1, single buffered']
    #allocation6 [shape = 's32[1]{0}', space=sflag, size = 0x4, scoped, tag = 'scoped memory for tpu_custom_call.1']
    #allocation7 [shape = 'u8[8192]{0}', space=vmem, size = 0x2000, scoped, tag = 'input window, operand 2, single buffered']
    #allocation8 [shape = 'u8[8192]{0}', space=vmem, size = 0x2000, scoped, tag = 'input window, operand 3, single buffered']
    #allocation9 [shape = 's32[1]{0}', space=sflag, size = 0x4, scoped, tag = 'scoped memory for tpu_custom_call.1']
    #allocation10 [shape = 'u8[16384]{0}', space=vmem, size = 0x4000, scoped, tag = 'input window, operand 4, single buffered']
    #allocation11 [shape = 'u8[16384]{0}', space=vmem, size = 0x4000, scoped, tag = 'input window, operand 5, single buffered']
    #allocation12 [shape = 's32[1]{0}', space=sflag, size = 0x4, scoped, tag = 'scoped memory for tpu_custom_call.1']
    #allocation13 [shape = 'u8[16384]{0}', space=vmem, size = 0x4000, scoped, tag = 'input window, operand 6, single buffered']
    #allocation14 [shape = 'u8[16384]{0}', space=vmem, size = 0x4000, scoped, tag = 'input window, operand 7, single buffered']
    #allocation15 [shape = 's32[1]{0}', space=sflag, size = 0x4, scoped, tag = 'scoped memory for tpu_custom_call.1']
    #allocation16 [shape = 'u8[8192]{0}', space=vmem, size = 0x2000, scoped, tag = 'output window, operand 0, single buffered']
    %14 = vsyncpa [#allocation3], 0
    %15 = vsyncpa [#allocation6], 0
    %16 = vsyncpa [#allocation9], 0
    %17 = vsyncpa [#allocation12], 0
    %18 = vsyncpa [#allocation15], 0
    %19 = vsyncpa [#allocation4], 0
    // Predicated region
    $region2: #{tpu_custom_call.1} parent=1 // pred_check
      _
    $region3: #{tpu_custom_call.1} parent=1 // pred_check_branch
      %21 = sbr.rel (0) target = $region5
    $region4: #{tpu_custom_call.1} parent=1 // pred_region
      %s23 = ssub.s32 256, 256
      %24 = vsyncadd [#allocation3], %s23
      %s25 = sshll.u32 [#allocation2], 4
      %s26 = int_to_ptr.vmem [resolvable:$true] %s25
      %31 = dma.hbm_to_vmem [thread:$0]  %s0, 256, %s26, [#allocation3], 128, 128, 8
    $region5: #{tpu_custom_call.1} parent=1 // pred_fallthru
      _
    // Predicated region
    $region6: #{tpu_custom_call.1} parent=1 // pred_check
      _
    $region7: #{tpu_custom_call.1} parent=1 // pred_check_branch
      %33 = sbr.rel (0) target = $region9
    $region8: #{tpu_custom_call.1} parent=1 // pred_region
      %s35 = ssub.s32 256, 256
      %36 = vsyncadd [#allocation6], %s35
      %s37 = sshll.u32 [#allocation5], 4
      %s38 = int_to_ptr.vmem [resolvable:$true] %s37
      %43 = dma.hbm_to_vmem [thread:$0]  %s1, 256, %s38, [#allocation6], 128, 128, 8
    $region9: #{tpu_custom_call.1} parent=1 // pred_fallthru
      _
    // Predicated region
    $region10: #{tpu_custom_call.1} parent=1 // pred_check
      _
    $region11: #{tpu_custom_call.1} parent=1 // pred_check_branch
      %45 = sbr.rel (0) target = $region13
    $region12: #{tpu_custom_call.1} parent=1 // pred_region
      %s47 = ssub.s32 256, 256
      %48 = vsyncadd [#allocation6], %s47
      %s49 = sshll.u32 [#allocation7], 4
      %s50 = int_to_ptr.vmem [resolvable:$true] %s49
      %55 = dma.hbm_to_vmem [thread:$0]  %s2, 256, %s50, [#allocation6], 128, 128, 8
    $region13: #{tpu_custom_call.1} parent=1 // pred_fallthru
      _
    // Predicated region
    $region14: #{tpu_custom_call.1} parent=1 // pred_check
      _
    $region15: #{tpu_custom_call.1} parent=1 // pred_check_branch
      %57 = sbr.rel (0) target = $region17
    $region16: #{tpu_custom_call.1} parent=1 // pred_region
      %s59 = ssub.s32 256, 256
      %60 = vsyncadd [#allocation9], %s59
      %s61 = sshll.u32 [#allocation8], 4
      %s62 = int_to_ptr.vmem [resolvable:$true] %s61
      %67 = dma.hbm_to_vmem [thread:$0]  %s3, 256, %s62, [#allocation9], 128, 128, 8
    $region17: #{tpu_custom_call.1} parent=1 // pred_fallthru
      _
    // Predicated region
    $region18: #{tpu_custom_call.1} parent=1 // pred_check
      _
    $region19: #{tpu_custom_call.1} parent=1 // pred_check_branch
      %69 = sbr.rel (0) target = $region21
    $region20: #{tpu_custom_call.1} parent=1 // pred_region
      %s71 = ssub.s32 512, 512
      %72 = vsyncadd [#allocation9], %s71
      %s73 = sshll.u32 [#allocation10], 4
      %s74 = int_to_ptr.vmem [resolvable:$true] %s73
      %79 = dma.hbm_to_vmem [thread:$0]  %s4, 512, %s74, [#allocation9], 128, 128, 8
    $region21: #{tpu_custom_call.1} parent=1 // pred_fallthru
      _
    // Predicated region
    $region22: #{tpu_custom_call.1} parent=1 // pred_check
      _
    $region23: #{tpu_custom_call.1} parent=1 // pred_check_branch
      %81 = sbr.rel (0) target = $region25
    $region24: #{tpu_custom_call.1} parent=1 // pred_region
      %s83 = ssub.s32 512, 512
      %84 = vsyncadd [#allocation12], %s83
      %s85 = sshll.u32 [#allocation11], 4
      %s86 = int_to_ptr.vmem [resolvable:$true] %s85
      %91 = dma.hbm_to_vmem [thread:$0]  %s5, 512, %s86, [#allocation12], 128, 128, 8
    $region25: #{tpu_custom_call.1} parent=1 // pred_fallthru
      _
    // Predicated region
    $region26: #{tpu_custom_call.1} parent=1 // pred_check
      _
    $region27: #{tpu_custom_call.1} parent=1 // pred_check_branch
      %93 = sbr.rel (0) target = $region29
    $region28: #{tpu_custom_call.1} parent=1 // pred_region
      %s95 = ssub.s32 512, 512
      %96 = vsyncadd [#allocation12], %s95
      %s97 = sshll.u32 [#allocation13], 4
      %s98 = int_to_ptr.vmem [resolvable:$true] %s97
      %103 = dma.hbm_to_vmem [thread:$0]  %s6, 512, %s98, [#allocation12], 128, 128, 8
    $region29: #{tpu_custom_call.1} parent=1 // pred_fallthru
      _
    // Predicated region
    $region30: #{tpu_custom_call.1} parent=1 // pred_check
      _
    $region31: #{tpu_custom_call.1} parent=1 // pred_check_branch
      %105 = sbr.rel (0) target = $region33
    $region32: #{tpu_custom_call.1} parent=1 // pred_region
      %s107 = ssub.s32 512, 512
      %108 = vsyncadd [#allocation15], %s107
      %s109 = sshll.u32 [#allocation14], 4
      %s110 = int_to_ptr.vmem [resolvable:$true] %s109
      %115 = dma.hbm_to_vmem [thread:$0]  %s7, 512, %s110, [#allocation15], 128, 128, 8
    $region33: #{tpu_custom_call.1} parent=1 // pred_fallthru
      _
    // Predicated region
    $region34: #{tpu_custom_call.1} parent=1 // pred_check
      _
    $region35: #{tpu_custom_call.1} parent=1 // pred_check_branch
      %117 = sbr.rel (0) target = $region37
    $region36: #{tpu_custom_call.1} parent=1 // pred_region
      _
    $region37: #{tpu_custom_call.1} parent=1 // pred_fallthru
      _
    // Predicated region
    $region38: #{tpu_custom_call.1} parent=1 // pred_check
      _
    $region39: #{tpu_custom_call.1} parent=1 // pred_check_branch
      %119 = sbr.rel (0) target = $region41
    $region40: #{tpu_custom_call.1} parent=1 // pred_region
      %120 = dma.done [#allocation3], 256
    $region41: #{tpu_custom_call.1} parent=1 // pred_fallthru
      _
    // Predicated region
    $region42: #{tpu_custom_call.1} parent=1 // pred_check
      _
    $region43: #{tpu_custom_call.1} parent=1 // pred_check_branch
      %122 = sbr.rel (0) target = $region45
    $region44: #{tpu_custom_call.1} parent=1 // pred_region
      %123 = dma.done [#allocation6], 256
    $region45: #{tpu_custom_call.1} parent=1 // pred_fallthru
      _
    // Predicated region
    $region46: #{tpu_custom_call.1} parent=1 // pred_check
      _
    $region47: #{tpu_custom_call.1} parent=1 // pred_check_branch
      %125 = sbr.rel (0) target = $region49
    $region48: #{tpu_custom_call.1} parent=1 // pred_region
      %126 = dma.done [#allocation6], 256
    $region49: #{tpu_custom_call.1} parent=1 // pred_fallthru
      _
    // Predicated region
    $region50: #{tpu_custom_call.1} parent=1 // pred_check
      _
    $region51: #{tpu_custom_call.1} parent=1 // pred_check_branch
      %128 = sbr.rel (0) target = $region53
    $region52: #{tpu_custom_call.1} parent=1 // pred_region
      %129 = dma.done [#allocation9], 256
    $region53: #{tpu_custom_call.1} parent=1 // pred_fallthru
      _
    // Predicated region
    $region54: #{tpu_custom_call.1} parent=1 // pred_check
      _
    $region55: #{tpu_custom_call.1} parent=1 // pred_check_branch
      %131 = sbr.rel (0) target = $region57
    $region56: #{tpu_custom_call.1} parent=1 // pred_region
      %132 = dma.done [#allocation9], 512
    $region57: #{tpu_custom_call.1} parent=1 // pred_fallthru
      _
    // Predicated region
    $region58: #{tpu_custom_call.1} parent=1 // pred_check
      _
    $region59: #{tpu_custom_call.1} parent=1 // pred_check_branch
      %134 = sbr.rel (0) target = $region61
    $region60: #{tpu_custom_call.1} parent=1 // pred_region
      %135 = dma.done [#allocation12], 512
    $region61: #{tpu_custom_call.1} parent=1 // pred_fallthru
      _
    // Predicated region
    $region62: #{tpu_custom_call.1} parent=1 // pred_check
      _
    $region63: #{tpu_custom_call.1} parent=1 // pred_check_branch
      %137 = sbr.rel (0) target = $region65
    $region64: #{tpu_custom_call.1} parent=1 // pred_region
      %138 = dma.done [#allocation12], 512
    $region65: #{tpu_custom_call.1} parent=1 // pred_fallthru
      _
    // Predicated region
    $region66: #{tpu_custom_call.1} parent=1 // pred_check
      _
    $region67: #{tpu_custom_call.1} parent=1 // pred_check_branch
      %140 = sbr.rel (0) target = $region69
    $region68: #{tpu_custom_call.1} parent=1 // pred_region
      %141 = dma.done [#allocation15], 512
    $region69: #{tpu_custom_call.1} parent=1 // pred_fallthru
      _
    %v142 = vld [vmem:[#allocation2] sm:$0xff]
    %v143 = vld [vmem:[#allocation2 + $0x8] sm:$0xff]
    %v144 = vld [vmem:[#allocation10] sm:$0xff]
    %v145 = vld [vmem:[#allocation10 + $0x8] sm:$0xff]
    %v146 = vld [vmem:[#allocation10 + $0x10] sm:$0xff]
    %v147 = vld [vmem:[#allocation10 + $0x18] sm:$0xff]
    %vm148 = vcmask 261120
    %v150 = vsel %vm148, %v142, 0
    %v153 = vsel %vm148, %v143, 0
    %155 = vmatprep.subr.mxu0 0.0
    %156 = vmatpush1.msra.mxu0 0.0
    %157 = vmatprep.subr.mxu0 0.0
    %158 = vmatpush1.msra.mxu0 0.0
    %159 = vmatprep.subr.mxu0 0.0
    %160 = vmatpush1.msra.mxu0 0.0
    %161 = vmatprep.subr.mxu0 0.0
    %162 = vmatpush1.msra.mxu0 0.0
    %163 = vmatprep.subr.mxu0 0.0
    %164 = vmatpush1.msra.mxu0 0.0
    %165 = vmatprep.subr.mxu0 0.0
    %166 = vmatpush1.msra.mxu0 0.0
    %167 = vmatprep.subr.mxu0 0.0
    %168 = vmatpush1.msra.mxu0 0.0
    %169 = vmatprep.subr.mxu0 0.0
    %170 = vmatpush1.msra.mxu0 0.0
    %171 = vmatprep.subr.mxu0 0.0
    %172 = vmatpush1.msra.mxu0 0.0
    %173 = vmatprep.subr.mxu0 0.0
    %174 = vmatpush1.msra.mxu0 0.0
    %175 = vmatprep.subr.mxu0 0.0
    %176 = vmatpush1.msra.mxu0 0.0
    %177 = vmatprep.subr.mxu0 0.0
    %178 = vmatpush1.msra.mxu0 0.0
    %179 = vmatprep.subr.mxu0 0.0
    %180 = vmatpush1.msra.mxu0 %v147
    %181 = vmatprep.subr.mxu0 0.0
    %182 = vmatpush1.msra.mxu0 %v146
    %183 = vmatprep.subr.mxu0 0.0
    %184 = vmatpush1.msra.mxu0 %v145
    %185 = vmatprep.subr.mxu0 0.0
    %186 = vmatpush1.msra.mxu0 %v144
    %187 = vmatprep.subr.mxu0 0.0
    %188 = vmatpush2.msra.mxu0 0.0
    %189 = vmatprep.subr.mxu0 0.0
    %190 = vmatpush2.msra.mxu0 0.0
    %191 = vmatprep.subr.mxu0 0.0
    %192 = vmatpush2.msra.mxu0 0.0
    %193 = vmatprep.subr.mxu0 0.0
    %194 = vmatpush2.msra.mxu0 0.0
    %195 = vmatprep.subr.mxu0 0.0
    %196 = vmatpush2.msra.mxu0 0.0
    %197 = vmatprep.subr.mxu0 0.0
    %198 = vmatpush2.msra.mxu0 0.0
    %199 = vmatprep.subr.mxu0 0.0
    %200 = vmatpush2.msra.mxu0 0.0
    %201 = vmatprep.subr.mxu0 0.0
    %202 = vmatpush2.msra.mxu0 0.0
    %203 = vmatprep.subr.mxu0 0.0
    %204 = vmatpush2.msra.mxu0 0.0
    %205 = vmatprep.subr.mxu0 0.0
    %206 = vmatpush2.msra.mxu0 0.0
    %207 = vmatprep.subr.mxu0 0.0
    %208 = vmatpush2.msra.mxu0 0.0
    %209 = vmatprep.subr.mxu0 0.0
    %210 = vmatpush2.msra.mxu0 0.0
    %211 = vmatprep.subr.mxu0 0.0
    %212 = vmatpush2.msra.mxu0 0.0
    %213 = vmatprep.subr.mxu0 0.0
    %214 = vmatpush2.msra.mxu0 0.0
    %215 = vmatprep.subr.mxu0 0.0
    %216 = vmatpush2.msra.mxu0 0.0
    %217 = vmatprep.subr.mxu0 0.0
    %218 = vmatpush2.msra.mxu0 0.0
    %219 = vmatprep.mubr.f32.mxu0 0.0
    %220 = vmatmul.mubr.f32.gmra.mxu0 %v150
    %v221 = vpop.f32.mrf.mxu0
    %v222 = vadd.f32 0.0, %v221
    %v223 = vpop.f32.mrf.mxu0
    %224 = vmatprep.mubr.f32.mxu0 0.0
    %225 = vmatmul.mubr.f32.gmra.mxu0 %v153
    %v226 = vpop.f32.mrf.mxu0
    %v227 = vadd.f32 0.0, %v226
    %v228 = vpop.f32.mrf.mxu0
    %229 = vdwg.mxu0
    %v230 = vld [vmem:[#allocation5] sm:$0xff]
    %v231 = vld [vmem:[#allocation5 + $0x8] sm:$0xff]
    %v232 = vld [vmem:[#allocation11] sm:$0xff]
    %v233 = vld [vmem:[#allocation11 + $0x8] sm:$0xff]
    %v234 = vld [vmem:[#allocation11 + $0x10] sm:$0xff]
    %v235 = vld [vmem:[#allocation11 + $0x18] sm:$0xff]
    %v237 = vsel %vm148, %v230, 0
    %v240 = vsel %vm148, %v231, 0
    %242 = vmatprep.subr.mxu0 0.0
    %243 = vmatpush1.msra.mxu0 0.0
    %244 = vmatprep.subr.mxu0 0.0
    %245 = vmatpush1.msra.mxu0 0.0
    %246 = vmatprep.subr.mxu0 0.0
    %247 = vmatpush1.msra.mxu0 0.0
    %248 = vmatprep.subr.mxu0 0.0
    %249 = vmatpush1.msra.mxu0 0.0
    %250 = vmatprep.subr.mxu0 0.0
    %251 = vmatpush1.msra.mxu0 0.0
    %252 = vmatprep.subr.mxu0 0.0
    %253 = vmatpush1.msra.mxu0 0.0
    %254 = vmatprep.subr.mxu0 0.0
    %255 = vmatpush1.msra.mxu0 0.0
    %256 = vmatprep.subr.mxu0 0.0
    %257 = vmatpush1.msra.mxu0 0.0
    %258 = vmatprep.subr.mxu0 0.0
    %259 = vmatpush1.msra.mxu0 0.0
    %260 = vmatprep.subr.mxu0 0.0
    %261 = vmatpush1.msra.mxu0 0.0
    %262 = vmatprep.subr.mxu0 0.0
    %263 = vmatpush1.msra.mxu0 0.0
    %264 = vmatprep.subr.mxu0 0.0
    %265 = vmatpush1.msra.mxu0 0.0
    %266 = vmatprep.subr.mxu0 0.0
    %267 = vmatpush1.msra.mxu0 %v235
    %268 = vmatprep.subr.mxu0 0.0
    %269 = vmatpush1.msra.mxu0 %v234
    %270 = vmatprep.subr.mxu0 0.0
    %271 = vmatpush1.msra.mxu0 %v233
    %272 = vmatprep.subr.mxu0 0.0
    %273 = vmatpush1.msra.mxu0 %v232
    %274 = vmatprep.subr.mxu0 0.0
    %275 = vmatpush2.msra.mxu0 0.0
    %276 = vmatprep.subr.mxu0 0.0
    %277 = vmatpush2.msra.mxu0 0.0
    %278 = vmatprep.subr.mxu0 0.0
    %279 = vmatpush2.msra.mxu0 0.0
    %280 = vmatprep.subr.mxu0 0.0
    %281 = vmatpush2.msra.mxu0 0.0
    %282 = vmatprep.subr.mxu0 0.0
    %283 = vmatpush2.msra.mxu0 0.0
    %284 = vmatprep.subr.mxu0 0.0
    %285 = vmatpush2.msra.mxu0 0.0
    %286 = vmatprep.subr.mxu0 0.0
    %287 = vmatpush2.msra.mxu0 0.0
    %288 = vmatprep.subr.mxu0 0.0
    %289 = vmatpush2.msra.mxu0 0.0
    %290 = vmatprep.subr.mxu0 0.0
    %291 = vmatpush2.msra.mxu0 0.0
    %292 = vmatprep.subr.mxu0 0.0
    %293 = vmatpush2.msra.mxu0 0.0
    %294 = vmatprep.subr.mxu0 0.0
    %295 = vmatpush2.msra.mxu0 0.0
    %296 = vmatprep.subr.mxu0 0.0
    %297 = vmatpush2.msra.mxu0 0.0
    %298 = vmatprep.subr.mxu0 0.0
    %299 = vmatpush2.msra.mxu0 0.0
    %300 = vmatprep.subr.mxu0 0.0
    %301 = vmatpush2.msra.mxu0 0.0
    %302 = vmatprep.subr.mxu0 0.0
    %303 = vmatpush2.msra.mxu0 0.0
    %304 = vmatprep.subr.mxu0 0.0
    %305 = vmatpush2.msra.mxu0 0.0
    %306 = vmatprep.mubr.f32.mxu0 0.0
    %307 = vmatmul.mubr.f32.gmra.mxu0 %v237
    %v308 = vpop.f32.mrf.mxu0
    %v309 = vadd.f32 0.0, %v308
    %v310 = vpop.f32.mrf.mxu0
    %311 = vmatprep.mubr.f32.mxu0 0.0
    %312 = vmatmul.mubr.f32.gmra.mxu0 %v240
    %v313 = vpop.f32.mrf.mxu0
    %v314 = vadd.f32 0.0, %v313
    %v315 = vpop.f32.mrf.mxu0
    %316 = vdwg.mxu0
    %v317 = vld [vmem:[#allocation7] sm:$0xff]
    %v318 = vld [vmem:[#allocation7 + $0x8] sm:$0xff]
    %v319 = vld [vmem:[#allocation13] sm:$0xff]
    %v320 = vld [vmem:[#allocation13 + $0x8] sm:$0xff]
    %v321 = vld [vmem:[#allocation13 + $0x10] sm:$0xff]
    %v322 = vld [vmem:[#allocation13 + $0x18] sm:$0xff]
    %v324 = vsel %vm148, %v317, 0
    %v327 = vsel %vm148, %v318, 0
    %329 = vmatprep.subr.mxu0 0.0
    %330 = vmatpush1.msra.mxu0 0.0
    %331 = vmatprep.subr.mxu0 0.0
    %332 = vmatpush1.msra.mxu0 0.0
    %333 = vmatprep.subr.mxu0 0.0
    %334 = vmatpush1.msra.mxu0 0.0
    %335 = vmatprep.subr.mxu0 0.0
    %336 = vmatpush1.msra.mxu0 0.0
    %337 = vmatprep.subr.mxu0 0.0
    %338 = vmatpush1.msra.mxu0 0.0
    %339 = vmatprep.subr.mxu0 0.0
    %340 = vmatpush1.msra.mxu0 0.0
    %341 = vmatprep.subr.mxu0 0.0
    %342 = vmatpush1.msra.mxu0 0.0
    %343 = vmatprep.subr.mxu0 0.0
    %344 = vmatpush1.msra.mxu0 0.0
    %345 = vmatprep.subr.mxu0 0.0
    %346 = vmatpush1.msra.mxu0 0.0
    %347 = vmatprep.subr.mxu0 0.0
    %348 = vmatpush1.msra.mxu0 0.0
    %349 = vmatprep.subr.mxu0 0.0
    %350 = vmatpush1.msra.mxu0 0.0
    %351 = vmatprep.subr.mxu0 0.0
    %352 = vmatpush1.msra.mxu0 0.0
    %353 = vmatprep.subr.mxu0 0.0
    %354 = vmatpush1.msra.mxu0 %v322
    %355 = vmatprep.subr.mxu0 0.0
    %356 = vmatpush1.msra.mxu0 %v321
    %357 = vmatprep.subr.mxu0 0.0
    %358 = vmatpush1.msra.mxu0 %v320
    %359 = vmatprep.subr.mxu0 0.0
    %360 = vmatpush1.msra.mxu0 %v319
    %361 = vmatprep.subr.mxu0 0.0
    %362 = vmatpush2.msra.mxu0 0.0
    %363 = vmatprep.subr.mxu0 0.0
    %364 = vmatpush2.msra.mxu0 0.0
    %365 = vmatprep.subr.mxu0 0.0
    %366 = vmatpush2.msra.mxu0 0.0
    %367 = vmatprep.subr.mxu0 0.0
    %368 = vmatpush2.msra.mxu0 0.0
    %369 = vmatprep.subr.mxu0 0.0
    %370 = vmatpush2.msra.mxu0 0.0
    %371 = vmatprep.subr.mxu0 0.0
    %372 = vmatpush2.msra.mxu0 0.0
    %373 = vmatprep.subr.mxu0 0.0
    %374 = vmatpush2.msra.mxu0 0.0
    %375 = vmatprep.subr.mxu0 0.0
    %376 = vmatpush2.msra.mxu0 0.0
    %377 = vmatprep.subr.mxu0 0.0
    %378 = vmatpush2.msra.mxu0 0.0
    %379 = vmatprep.subr.mxu0 0.0
    %380 = vmatpush2.msra.mxu0 0.0
    %381 = vmatprep.subr.mxu0 0.0
    %382 = vmatpush2.msra.mxu0 0.0
    %383 = vmatprep.subr.mxu0 0.0
    %384 = vmatpush2.msra.mxu0 0.0
    %385 = vmatprep.subr.mxu0 0.0
    %386 = vmatpush2.msra.mxu0 0.0
    %387 = vmatprep.subr.mxu0 0.0
    %388 = vmatpush2.msra.mxu0 0.0
    %389 = vmatprep.subr.mxu0 0.0
    %390 = vmatpush2.msra.mxu0 0.0
    %391 = vmatprep.subr.mxu0 0.0
    %392 = vmatpush2.msra.mxu0 0.0
    %393 = vmatprep.mubr.f32.mxu0 0.0
    %394 = vmatmul.mubr.f32.gmra.mxu0 %v324
    %v395 = vpop.f32.mrf.mxu0
    %v396 = vadd.f32 0.0, %v395
    %v397 = vpop.f32.mrf.mxu0
    %398 = vmatprep.mubr.f32.mxu0 0.0
    %399 = vmatmul.mubr.f32.gmra.mxu0 %v327
    %v400 = vpop.f32.mrf.mxu0
    %v401 = vadd.f32 0.0, %v400
    %v402 = vpop.f32.mrf.mxu0
    %403 = vdwg.mxu0
    %v404 = vld [vmem:[%s8] sm:$0x1]
    %v405 = vld [vmem:[#allocation8] sm:$0xff]
    %vm406 = vcmask 64512
    %v408 = vsel %vm406, %v222, 0
    %v411 = vsel %vm406, %v309, 0
    %413 = vmatprep.subr.mxu0 0.0
    %414 = vmatpush1.xpose.msra.mxu0 0.0
    %415 = vmatprep.subr.mxu0 0.0
    %416 = vmatpush1.xpose.msra.mxu0 0.0
    %417 = vmatprep.subr.mxu0 0.0
    %418 = vmatpush1.xpose.msra.mxu0 0.0
    %419 = vmatprep.subr.mxu0 0.0
    %420 = vmatpush1.xpose.msra.mxu0 0.0
    %421 = vmatprep.subr.mxu0 0.0
    %422 = vmatpush1.xpose.msra.mxu0 0.0
    %423 = vmatprep.subr.mxu0 0.0
    %424 = vmatpush1.xpose.msra.mxu0 0.0
    %425 = vmatprep.subr.mxu0 0.0
    %426 = vmatpush1.xpose.msra.mxu0 0.0
    %427 = vmatprep.subr.mxu0 0.0
    %428 = vmatpush1.xpose.msra.mxu0 0.0
    %429 = vmatprep.subr.mxu0 0.0
    %430 = vmatpush1.xpose.msra.mxu0 0.0
    %431 = vmatprep.subr.mxu0 0.0
    %432 = vmatpush1.xpose.msra.mxu0 0.0
    %433 = vmatprep.subr.mxu0 0.0
    %434 = vmatpush1.xpose.msra.mxu0 0.0
    %435 = vmatprep.subr.mxu0 0.0
    %436 = vmatpush1.xpose.msra.mxu0 0.0
    %437 = vmatprep.subr.mxu0 0.0
    %438 = vmatpush1.xpose.msra.mxu0 0.0
    %439 = vmatprep.subr.mxu0 0.0
    %440 = vmatpush1.xpose.msra.mxu0 0.0
    %441 = vmatprep.subr.mxu0 0.0
    %442 = vmatpush1.xpose.msra.mxu0 0.0
    %443 = vmatprep.subr.mxu0 0.0
    %444 = vmatpush1.xpose.msra.mxu0 %v411
    %445 = vmatprep.subr.mxu0 0.0
    %446 = vmatpush2.xpose.msra.mxu0 0.0
    %447 = vmatprep.subr.mxu0 0.0
    %448 = vmatpush2.xpose.msra.mxu0 0.0
    %449 = vmatprep.subr.mxu0 0.0
    %450 = vmatpush2.xpose.msra.mxu0 0.0
    %451 = vmatprep.subr.mxu0 0.0
    %452 = vmatpush2.xpose.msra.mxu0 0.0
    %453 = vmatprep.subr.mxu0 0.0
    %454 = vmatpush2.xpose.msra.mxu0 0.0
    %455 = vmatprep.subr.mxu0 0.0
    %456 = vmatpush2.xpose.msra.mxu0 0.0
    %457 = vmatprep.subr.mxu0 0.0
    %458 = vmatpush2.xpose.msra.mxu0 0.0
    %459 = vmatprep.subr.mxu0 0.0
    %460 = vmatpush2.xpose.msra.mxu0 0.0
    %461 = vmatprep.subr.mxu0 0.0
    %462 = vmatpush2.xpose.msra.mxu0 0.0
    %463 = vmatprep.subr.mxu0 0.0
    %464 = vmatpush2.xpose.msra.mxu0 0.0
    %465 = vmatprep.subr.mxu0 0.0
    %466 = vmatpush2.xpose.msra.mxu0 0.0
    %467 = vmatprep.subr.mxu0 0.0
    %468 = vmatpush2.xpose.msra.mxu0 0.0
    %469 = vmatprep.subr.mxu0 0.0
    %470 = vmatpush2.xpose.msra.mxu0 0.0
    %471 = vmatprep.subr.mxu0 0.0
    %472 = vmatpush2.xpose.msra.mxu0 0.0
    %473 = vmatprep.subr.mxu0 0.0
    %474 = vmatpush2.xpose.msra.mxu0 0.0
    %475 = vmatprep.subr.mxu0 0.0
    %476 = vmatpush2.xpose.msra.mxu0 0.0
    %477 = vmatprep.mubr.f32.mxu0 0.0
    %478 = vmatmul.mubr.f32.gmra.mxu0 %v408
    %v479 = vpop.f32.mrf.mxu0
    %v480 = vadd.f32 %v405, %v479
    %v481 = vpop.f32.mrf.mxu0
    %482 = vdwg.mxu0
    %v483 = vmul.f32 %v480, 0.17677669
    %v484 = vsel %vm406, %v483, -inf
    %485 = vmax.xlane.f32.xlu0 %v484
    %v486 = vpop.xlane.xlu0 %485
    %v487 = vsub.f32 %v483, %v486
    %v488 = vmul.f32 %v487, 1.442695
    %v489 = vpow.pop %v488
    %v490 = vsel %vm406, %v489, 0.0
    %491 = vadd.xlane.f32.xlu0 %v490
    %v492 = vpop.xlane.xlu0 %491
    %v493 = vrcp.pop %v492
    %v494 = vmul.f32 %v489, %v493
    %v496 = vsel %vm406, %v494, 0
    %498 = vmatprep.subr.mxu0 0.0
    %499 = vmatpush1.msra.mxu0 0.0
    %500 = vmatprep.subr.mxu0 0.0
    %501 = vmatpush1.msra.mxu0 0.0
    %502 = vmatprep.subr.mxu0 0.0
    %503 = vmatpush1.msra.mxu0 0.0
    %504 = vmatprep.subr.mxu0 0.0
    %505 = vmatpush1.msra.mxu0 0.0
    %506 = vmatprep.subr.mxu0 0.0
    %507 = vmatpush1.msra.mxu0 0.0
    %508 = vmatprep.subr.mxu0 0.0
    %509 = vmatpush1.msra.mxu0 0.0
    %510 = vmatprep.subr.mxu0 0.0
    %511 = vmatpush1.msra.mxu0 0.0
    %512 = vmatprep.subr.mxu0 0.0
    %513 = vmatpush1.msra.mxu0 0.0
    %514 = vmatprep.subr.mxu0 0.0
    %515 = vmatpush1.msra.mxu0 0.0
    %516 = vmatprep.subr.mxu0 0.0
    %517 = vmatpush1.msra.mxu0 0.0
    %518 = vmatprep.subr.mxu0 0.0
    %519 = vmatpush1.msra.mxu0 0.0
    %520 = vmatprep.subr.mxu0 0.0
    %521 = vmatpush1.msra.mxu0 0.0
    %522 = vmatprep.subr.mxu0 0.0
    %523 = vmatpush1.msra.mxu0 0.0
    %524 = vmatprep.subr.mxu0 0.0
    %525 = vmatpush1.msra.mxu0 0.0
    %526 = vmatprep.subr.mxu0 0.0
    %527 = vmatpush1.msra.mxu0 0.0
    %528 = vmatprep.subr.mxu0 0.0
    %529 = vmatpush1.msra.mxu0 %v396
    %530 = vmatprep.subr.mxu0 0.0
    %531 = vmatpush2.msra.mxu0 0.0
    %532 = vmatprep.subr.mxu0 0.0
    %533 = vmatpush2.msra.mxu0 0.0
    %534 = vmatprep.subr.mxu0 0.0
    %535 = vmatpush2.msra.mxu0 0.0
    %536 = vmatprep.subr.mxu0 0.0
    %537 = vmatpush2.msra.mxu0 0.0
    %538 = vmatprep.subr.mxu0 0.0
    %539 = vmatpush2.msra.mxu0 0.0
    %540 = vmatprep.subr.mxu0 0.0
    %541 = vmatpush2.msra.mxu0 0.0
    %542 = vmatprep.subr.mxu0 0.0
    %543 = vmatpush2.msra.mxu0 0.0
    %544 = vmatprep.subr.mxu0 0.0
    %545 = vmatpush2.msra.mxu0 0.0
    %546 = vmatprep.subr.mxu0 0.0
    %547 = vmatpush2.msra.mxu0 0.0
    %548 = vmatprep.subr.mxu0 0.0
    %549 = vmatpush2.msra.mxu0 0.0
    %550 = vmatprep.subr.mxu0 0.0
    %551 = vmatpush2.msra.mxu0 0.0
    %552 = vmatprep.subr.mxu0 0.0
    %553 = vmatpush2.msra.mxu0 0.0
    %554 = vmatprep.subr.mxu0 0.0
    %555 = vmatpush2.msra.mxu0 0.0
    %556 = vmatprep.subr.mxu0 0.0
    %557 = vmatpush2.msra.mxu0 0.0
    %558 = vmatprep.subr.mxu0 0.0
    %559 = vmatpush2.msra.mxu0 0.0
    %560 = vmatprep.subr.mxu0 0.0
    %561 = vmatpush2.msra.mxu0 0.0
    %562 = vmatprep.mubr.f32.mxu0 0.0
    %563 = vmatmul.mubr.f32.gmra.mxu0 %v496
    %v564 = vpop.f32.mrf.mxu0
    %v565 = vadd.f32 0.0, %v564
    %v566 = vpop.f32.mrf.mxu0
    %567 = vdwg.mxu0
    %v568 = vld [vmem:[#allocation14] sm:$0xff]
    %569 = vrot.lane.b32.xlu0 %v222, 120
    %v570 = vpop.permute.xlu0 %569
    %571 = vrot.lane.b32.xlu0 %v309, 120
    %v572 = vpop.permute.xlu0 %571
    %v573 = vsel %vm406, %v570, 0
    %v575 = vsel %vm406, %v572, 0
    %577 = vmatprep.subr.mxu0 0.0
    %578 = vmatpush1.xpose.msra.mxu0 0.0
    %579 = vmatprep.subr.mxu0 0.0
    %580 = vmatpush1.xpose.msra.mxu0 0.0
    %581 = vmatprep.subr.mxu0 0.0
    %582 = vmatpush1.xpose.msra.mxu0 0.0
    %583 = vmatprep.subr.mxu0 0.0
    %584 = vmatpush1.xpose.msra.mxu0 0.0
    %585 = vmatprep.subr.mxu0 0.0
    %586 = vmatpush1.xpose.msra.mxu0 0.0
    %587 = vmatprep.subr.mxu0 0.0
    %588 = vmatpush1.xpose.msra.mxu0 0.0
    %589 = vmatprep.subr.mxu0 0.0
    %590 = vmatpush1.xpose.msra.mxu0 0.0
    %591 = vmatprep.subr.mxu0 0.0
    %592 = vmatpush1.xpose.msra.mxu0 0.0
    %593 = vmatprep.subr.mxu0 0.0
    %594 = vmatpush1.xpose.msra.mxu0 0.0
    %595 = vmatprep.subr.mxu0 0.0
    %596 = vmatpush1.xpose.msra.mxu0 0.0
    %597 = vmatprep.subr.mxu0 0.0
    %598 = vmatpush1.xpose.msra.mxu0 0.0
    %599 = vmatprep.subr.mxu0 0.0
    %600 = vmatpush1.xpose.msra.mxu0 0.0
    %601 = vmatprep.subr.mxu0 0.0
    %602 = vmatpush1.xpose.msra.mxu0 0.0
    %603 = vmatprep.subr.mxu0 0.0
    %604 = vmatpush1.xpose.msra.mxu0 0.0
    %605 = vmatprep.subr.mxu0 0.0
    %606 = vmatpush1.xpose.msra.mxu0 0.0
    %607 = vmatprep.subr.mxu0 0.0
    %608 = vmatpush1.xpose.msra.mxu0 %v575
    %609 = vmatprep.subr.mxu0 0.0
    %610 = vmatpush2.xpose.msra.mxu0 0.0
    %611 = vmatprep.subr.mxu0 0.0
    %612 = vmatpush2.xpose.msra.mxu0 0.0
    %613 = vmatprep.subr.mxu0 0.0
    %614 = vmatpush2.xpose.msra.mxu0 0.0
    %615 = vmatprep.subr.mxu0 0.0
    %616 = vmatpush2.xpose.msra.mxu0 0.0
    %617 = vmatprep.subr.mxu0 0.0
    %618 = vmatpush2.xpose.msra.mxu0 0.0
    %619 = vmatprep.subr.mxu0 0.0
    %620 = vmatpush2.xpose.msra.mxu0 0.0
    %621 = vmatprep.subr.mxu0 0.0
    %622 = vmatpush2.xpose.msra.mxu0 0.0
    %623 = vmatprep.subr.mxu0 0.0
    %624 = vmatpush2.xpose.msra.mxu0 0.0
    %625 = vmatprep.subr.mxu0 0.0
    %626 = vmatpush2.xpose.msra.mxu0 0.0
    %627 = vmatprep.subr.mxu0 0.0
    %628 = vmatpush2.xpose.msra.mxu0 0.0
    %629 = vmatprep.subr.mxu0 0.0
    %630 = vmatpush2.xpose.msra.mxu0 0.0
    %631 = vmatprep.subr.mxu0 0.0
    %632 = vmatpush2.xpose.msra.mxu0 0.0
    %633 = vmatprep.subr.mxu0 0.0
    %634 = vmatpush2.xpose.msra.mxu0 0.0
    %635 = vmatprep.subr.mxu0 0.0
    %636 = vmatpush2.xpose.msra.mxu0 0.0
    %637 = vmatprep.subr.mxu0 0.0
    %638 = vmatpush2.xpose.msra.mxu0 0.0
    %639 = vmatprep.subr.mxu0 0.0
    %640 = vmatpush2.xpose.msra.mxu0 0.0
    %641 = vmatprep.mubr.f32.mxu0 0.0
    %642 = vmatmul.mubr.f32.gmra.mxu0 %v573
    %v643 = vpop.f32.mrf.mxu0
    %v644 = vadd.f32 %v405, %v643
    %v645 = vpop.f32.mrf.mxu0
    %646 = vdwg.mxu0
    %v647 = vmul.f32 %v644, 0.17677669
    %v648 = vsel %vm406, %v647, -inf
    %649 = vmax.xlane.f32.xlu0 %v648
    %v650 = vpop.xlane.xlu0 %649
    %v651 = vsub.f32 %v647, %v650
    %v652 = vmul.f32 %v651, 1.442695
    %v653 = vpow.pop %v652
    %v654 = vsel %vm406, %v653, 0.0
    %655 = vadd.xlane.f32.xlu0 %v654
    %v656 = vpop.xlane.xlu0 %655
    %v657 = vrcp.pop %v656
    %v658 = vmul.f32 %v653, %v657
    %660 = vrot.lane.b32.xlu0 %v396, 120
    %v661 = vpop.permute.xlu0 %660
    %v664 = vsel %vm406, %v658, 0
    %666 = vmatprep.subr.mxu0 0.0
    %667 = vmatpush1.msra.mxu0 0.0
    %668 = vmatprep.subr.mxu0 0.0
    %669 = vmatpush1.msra.mxu0 0.0
    %670 = vmatprep.subr.mxu0 0.0
    %671 = vmatpush1.msra.mxu0 0.0
    %672 = vmatprep.subr.mxu0 0.0
    %673 = vmatpush1.msra.mxu0 0.0
    %674 = vmatprep.subr.mxu0 0.0
    %675 = vmatpush1.msra.mxu0 0.0
    %676 = vmatprep.subr.mxu0 0.0
    %677 = vmatpush1.msra.mxu0 0.0
    %678 = vmatprep.subr.mxu0 0.0
    %679 = vmatpush1.msra.mxu0 0.0
    %680 = vmatprep.subr.mxu0 0.0
    %681 = vmatpush1.msra.mxu0 0.0
    %682 = vmatprep.subr.mxu0 0.0
    %683 = vmatpush1.msra.mxu0 0.0
    %684 = vmatprep.subr.mxu0 0.0
    %685 = vmatpush1.msra.mxu0 0.0
    %686 = vmatprep.subr.mxu0 0.0
    %687 = vmatpush1.msra.mxu0 0.0
    %688 = vmatprep.subr.mxu0 0.0
    %689 = vmatpush1.msra.mxu0 0.0
    %690 = vmatprep.subr.mxu0 0.0
    %691 = vmatpush1.msra.mxu0 0.0
    %692 = vmatprep.subr.mxu0 0.0
    %693 = vmatpush1.msra.mxu0 0.0
    %694 = vmatprep.subr.mxu0 0.0
    %695 = vmatpush1.msra.mxu0 0.0
    %696 = vmatprep.subr.mxu0 0.0
    %697 = vmatpush1.msra.mxu0 %v661
    %698 = vmatprep.subr.mxu0 0.0
    %699 = vmatpush2.msra.mxu0 0.0
    %700 = vmatprep.subr.mxu0 0.0
    %701 = vmatpush2.msra.mxu0 0.0
    %702 = vmatprep.subr.mxu0 0.0
    %703 = vmatpush2.msra.mxu0 0.0
    %704 = vmatprep.subr.mxu0 0.0
    %705 = vmatpush2.msra.mxu0 0.0
    %706 = vmatprep.subr.mxu0 0.0
    %707 = vmatpush2.msra.mxu0 0.0
    %708 = vmatprep.subr.mxu0 0.0
    %709 = vmatpush2.msra.mxu0 0.0
    %710 = vmatprep.subr.mxu0 0.0
    %711 = vmatpush2.msra.mxu0 0.0
    %712 = vmatprep.subr.mxu0 0.0
    %713 = vmatpush2.msra.mxu0 0.0
    %714 = vmatprep.subr.mxu0 0.0
    %715 = vmatpush2.msra.mxu0 0.0
    %716 = vmatprep.subr.mxu0 0.0
    %717 = vmatpush2.msra.mxu0 0.0
    %718 = vmatprep.subr.mxu0 0.0
    %719 = vmatpush2.msra.mxu0 0.0
    %720 = vmatprep.subr.mxu0 0.0
    %721 = vmatpush2.msra.mxu0 0.0
    %722 = vmatprep.subr.mxu0 0.0
    %723 = vmatpush2.msra.mxu0 0.0
    %724 = vmatprep.subr.mxu0 0.0
    %725 = vmatpush2.msra.mxu0 0.0
    %726 = vmatprep.subr.mxu0 0.0
    %727 = vmatpush2.msra.mxu0 0.0
    %728 = vmatprep.subr.mxu0 0.0
    %729 = vmatpush2.msra.mxu0 0.0
    %730 = vmatprep.mubr.f32.mxu0 0.0
    %731 = vmatmul.mubr.f32.gmra.mxu0 %v664
    %v732 = vpop.f32.mrf.mxu0
    %v733 = vadd.f32 0.0, %v732
    %v734 = vpop.f32.mrf.mxu0
    %735 = vdwg.mxu0
    %v736 = vld [vmem:[#allocation14 + $0x8] sm:$0xff]
    %v738 = vsel %vm406, %v733, 0
    %740 = vmatprep.subr.mxu0 0.0
    %741 = vmatpush1.msra.mxu0 0.0
    %742 = vmatprep.subr.mxu0 0.0
    %743 = vmatpush1.msra.mxu0 0.0
    %744 = vmatprep.subr.mxu0 0.0
    %745 = vmatpush1.msra.mxu0 0.0
    %746 = vmatprep.subr.mxu0 0.0
    %747 = vmatpush1.msra.mxu0 0.0
    %748 = vmatprep.subr.mxu0 0.0
    %749 = vmatpush1.msra.mxu0 0.0
    %750 = vmatprep.subr.mxu0 0.0
    %751 = vmatpush1.msra.mxu0 0.0
    %752 = vmatprep.subr.mxu0 0.0
    %753 = vmatpush1.msra.mxu0 0.0
    %754 = vmatprep.subr.mxu0 0.0
    %755 = vmatpush1.msra.mxu0 0.0
    %756 = vmatprep.subr.mxu0 0.0
    %757 = vmatpush1.msra.mxu0 0.0
    %758 = vmatprep.subr.mxu0 0.0
    %759 = vmatpush1.msra.mxu0 0.0
    %760 = vmatprep.subr.mxu0 0.0
    %761 = vmatpush1.msra.mxu0 0.0
    %762 = vmatprep.subr.mxu0 0.0
    %763 = vmatpush1.msra.mxu0 0.0
    %764 = vmatprep.subr.mxu0 0.0
    %765 = vmatpush1.msra.mxu0 0.0
    %766 = vmatprep.subr.mxu0 0.0
    %767 = vmatpush1.msra.mxu0 0.0
    %768 = vmatprep.subr.mxu0 0.0
    %769 = vmatpush1.msra.mxu0 0.0
    %770 = vmatprep.subr.mxu0 0.0
    %771 = vmatpush1.msra.mxu0 %v736
    %772 = vmatprep.subr.mxu0 0.0
    %773 = vmatpush2.msra.mxu0 0.0
    %774 = vmatprep.subr.mxu0 0.0
    %775 = vmatpush2.msra.mxu0 0.0
    %776 = vmatprep.subr.mxu0 0.0
    %777 = vmatpush2.msra.mxu0 0.0
    %778 = vmatprep.subr.mxu0 0.0
    %779 = vmatpush2.msra.mxu0 0.0
    %780 = vmatprep.subr.mxu0 0.0
    %781 = vmatpush2.msra.mxu0 0.0
    %782 = vmatprep.subr.mxu0 0.0
    %783 = vmatpush2.msra.mxu0 0.0
    %784 = vmatprep.subr.mxu0 0.0
    %785 = vmatpush2.msra.mxu0 0.0
    %786 = vmatprep.subr.mxu0 0.0
    %787 = vmatpush2.msra.mxu0 0.0
    %788 = vmatprep.subr.mxu0 0.0
    %789 = vmatpush2.msra.mxu0 0.0
    %790 = vmatprep.subr.mxu0 0.0
    %791 = vmatpush2.msra.mxu0 0.0
    %792 = vmatprep.subr.mxu0 0.0
    %793 = vmatpush2.msra.mxu0 0.0
    %794 = vmatprep.subr.mxu0 0.0
    %795 = vmatpush2.msra.mxu0 0.0
    %796 = vmatprep.subr.mxu0 0.0
    %797 = vmatpush2.msra.mxu0 0.0
    %798 = vmatprep.subr.mxu0 0.0
    %799 = vmatpush2.msra.mxu0 0.0
    %800 = vmatprep.subr.mxu0 0.0
    %801 = vmatpush2.msra.mxu0 0.0
    %802 = vmatprep.subr.mxu0 0.0
    %803 = vmatpush2.msra.mxu0 0.0
    %804 = vmatprep.mubr.f32.mxu0 0.0
    %805 = vmatmul.mubr.f32.gmra.mxu0 %v738
    %v806 = vpop.f32.mrf.mxu0
    %v807 = vadd.f32 0.0, %v806
    %v808 = vpop.f32.mrf.mxu0
    %809 = vdwg.mxu0
    %v811 = vsel %vm406, %v565, 0
    %813 = vmatprep.subr.mxu0 0.0
    %814 = vmatpush1.msra.mxu0 0.0
    %815 = vmatprep.subr.mxu0 0.0
    %816 = vmatpush1.msra.mxu0 0.0
    %817 = vmatprep.subr.mxu0 0.0
    %818 = vmatpush1.msra.mxu0 0.0
    %819 = vmatprep.subr.mxu0 0.0
    %820 = vmatpush1.msra.mxu0 0.0
    %821 = vmatprep.subr.mxu0 0.0
    %822 = vmatpush1.msra.mxu0 0.0
    %823 = vmatprep.subr.mxu0 0.0
    %824 = vmatpush1.msra.mxu0 0.0
    %825 = vmatprep.subr.mxu0 0.0
    %826 = vmatpush1.msra.mxu0 0.0
    %827 = vmatprep.subr.mxu0 0.0
    %828 = vmatpush1.msra.mxu0 0.0
    %829 = vmatprep.subr.mxu0 0.0
    %830 = vmatpush1.msra.mxu0 0.0
    %831 = vmatprep.subr.mxu0 0.0
    %832 = vmatpush1.msra.mxu0 0.0
    %833 = vmatprep.subr.mxu0 0.0
    %834 = vmatpush1.msra.mxu0 0.0
    %835 = vmatprep.subr.mxu0 0.0
    %836 = vmatpush1.msra.mxu0 0.0
    %837 = vmatprep.subr.mxu0 0.0
    %838 = vmatpush1.msra.mxu0 0.0
    %839 = vmatprep.subr.mxu0 0.0
    %840 = vmatpush1.msra.mxu0 0.0
    %841 = vmatprep.subr.mxu0 0.0
    %842 = vmatpush1.msra.mxu0 0.0
    %843 = vmatprep.subr.mxu0 0.0
    %844 = vmatpush1.msra.mxu0 %v568
    %845 = vmatprep.subr.mxu0 0.0
    %846 = vmatpush2.msra.mxu0 0.0
    %847 = vmatprep.subr.mxu0 0.0
    %848 = vmatpush2.msra.mxu0 0.0
    %849 = vmatprep.subr.mxu0 0.0
    %850 = vmatpush2.msra.mxu0 0.0
    %851 = vmatprep.subr.mxu0 0.0
    %852 = vmatpush2.msra.mxu0 0.0
    %853 = vmatprep.subr.mxu0 0.0
    %854 = vmatpush2.msra.mxu0 0.0
    %855 = vmatprep.subr.mxu0 0.0
    %856 = vmatpush2.msra.mxu0 0.0
    %857 = vmatprep.subr.mxu0 0.0
    %858 = vmatpush2.msra.mxu0 0.0
    %859 = vmatprep.subr.mxu0 0.0
    %860 = vmatpush2.msra.mxu0 0.0
    %861 = vmatprep.subr.mxu0 0.0
    %862 = vmatpush2.msra.mxu0 0.0
    %863 = vmatprep.subr.mxu0 0.0
    %864 = vmatpush2.msra.mxu0 0.0
    %865 = vmatprep.subr.mxu0 0.0
    %866 = vmatpush2.msra.mxu0 0.0
    %867 = vmatprep.subr.mxu0 0.0
    %868 = vmatpush2.msra.mxu0 0.0
    %869 = vmatprep.subr.mxu0 0.0
    %870 = vmatpush2.msra.mxu0 0.0
    %871 = vmatprep.subr.mxu0 0.0
    %872 = vmatpush2.msra.mxu0 0.0
    %873 = vmatprep.subr.mxu0 0.0
    %874 = vmatpush2.msra.mxu0 0.0
    %875 = vmatprep.subr.mxu0 0.0
    %876 = vmatpush2.msra.mxu0 0.0
    %877 = vmatprep.mubr.f32.mxu0 0.0
    %878 = vmatmul.mubr.f32.gmra.mxu0 %v811
    %v879 = vpop.f32.mrf.mxu0
    %v880 = vadd.f32 %v807, %v879
    %v881 = vpop.f32.mrf.mxu0
    %882 = vdwg.mxu0
    %883 = vrot.lane.b32.xlu0 %v222, 112
    %v884 = vpop.permute.xlu0 %883
    %885 = vrot.lane.b32.xlu0 %v309, 112
    %v886 = vpop.permute.xlu0 %885
    %v887 = vsel %vm406, %v884, 0
    %v889 = vsel %vm406, %v886, 0
    %891 = vmatprep.subr.mxu0 0.0
    %892 = vmatpush1.xpose.msra.mxu0 0.0
    %893 = vmatprep.subr.mxu0 0.0
    %894 = vmatpush1.xpose.msra.mxu0 0.0
    %895 = vmatprep.subr.mxu0 0.0
    %896 = vmatpush1.xpose.msra.mxu0 0.0
    %897 = vmatprep.subr.mxu0 0.0
    %898 = vmatpush1.xpose.msra.mxu0 0.0
    %899 = vmatprep.subr.mxu0 0.0
    %900 = vmatpush1.xpose.msra.mxu0 0.0
    %901 = vmatprep.subr.mxu0 0.0
    %902 = vmatpush1.xpose.msra.mxu0 0.0
    %903 = vmatprep.subr.mxu0 0.0
    %904 = vmatpush1.xpose.msra.mxu0 0.0
    %905 = vmatprep.subr.mxu0 0.0
    %906 = vmatpush1.xpose.msra.mxu0 0.0
    %907 = vmatprep.subr.mxu0 0.0
    %908 = vmatpush1.xpose.msra.mxu0 0.0
    %909 = vmatprep.subr.mxu0 0.0
    %910 = vmatpush1.xpose.msra.mxu0 0.0
    %911 = vmatprep.subr.mxu0 0.0
    %912 = vmatpush1.xpose.msra.mxu0 0.0
    %913 = vmatprep.subr.mxu0 0.0
    %914 = vmatpush1.xpose.msra.mxu0 0.0
    %915 = vmatprep.subr.mxu0 0.0
    %916 = vmatpush1.xpose.msra.mxu0 0.0
    %917 = vmatprep.subr.mxu0 0.0
    %918 = vmatpush1.xpose.msra.mxu0 0.0
    %919 = vmatprep.subr.mxu0 0.0
    %920 = vmatpush1.xpose.msra.mxu0 0.0
    %921 = vmatprep.subr.mxu0 0.0
    %922 = vmatpush1.xpose.msra.mxu0 %v889
    %923 = vmatprep.subr.mxu0 0.0
    %924 = vmatpush2.xpose.msra.mxu0 0.0
    %925 = vmatprep.subr.mxu0 0.0
    %926 = vmatpush2.xpose.msra.mxu0 0.0
    %927 = vmatprep.subr.mxu0 0.0
    %928 = vmatpush2.xpose.msra.mxu0 0.0
    %929 = vmatprep.subr.mxu0 0.0
    %930 = vmatpush2.xpose.msra.mxu0 0.0
    %931 = vmatprep.subr.mxu0 0.0
    %932 = vmatpush2.xpose.msra.mxu0 0.0
    %933 = vmatprep.subr.mxu0 0.0
    %934 = vmatpush2.xpose.msra.mxu0 0.0
    %935 = vmatprep.subr.mxu0 0.0
    %936 = vmatpush2.xpose.msra.mxu0 0.0
    %937 = vmatprep.subr.mxu0 0.0
    %938 = vmatpush2.xpose.msra.mxu0 0.0
    %939 = vmatprep.subr.mxu0 0.0
    %940 = vmatpush2.xpose.msra.mxu0 0.0
    %941 = vmatprep.subr.mxu0 0.0
    %942 = vmatpush2.xpose.msra.mxu0 0.0
    %943 = vmatprep.subr.mxu0 0.0
    %944 = vmatpush2.xpose.msra.mxu0 0.0
    %945 = vmatprep.subr.mxu0 0.0
    %946 = vmatpush2.xpose.msra.mxu0 0.0
    %947 = vmatprep.subr.mxu0 0.0
    %948 = vmatpush2.xpose.msra.mxu0 0.0
    %949 = vmatprep.subr.mxu0 0.0
    %950 = vmatpush2.xpose.msra.mxu0 0.0
    %951 = vmatprep.subr.mxu0 0.0
    %952 = vmatpush2.xpose.msra.mxu0 0.0
    %953 = vmatprep.subr.mxu0 0.0
    %954 = vmatpush2.xpose.msra.mxu0 0.0
    %955 = vmatprep.mubr.f32.mxu0 0.0
    %956 = vmatmul.mubr.f32.gmra.mxu0 %v887
    %v957 = vpop.f32.mrf.mxu0
    %v958 = vadd.f32 %v405, %v957
    %v959 = vpop.f32.mrf.mxu0
    %960 = vdwg.mxu0
    %v961 = vmul.f32 %v958, 0.17677669
    %v962 = vsel %vm406, %v961, -inf
    %963 = vmax.xlane.f32.xlu0 %v962
    %v964 = vpop.xlane.xlu0 %963
    %v965 = vsub.f32 %v961, %v964
    %v966 = vmul.f32 %v965, 1.442695
    %v967 = vpow.pop %v966
    %v968 = vsel %vm406, %v967, 0.0
    %969 = vadd.xlane.f32.xlu0 %v968
    %v970 = vpop.xlane.xlu0 %969
    %v971 = vrcp.pop %v970
    %v972 = vmul.f32 %v967, %v971
    %973 = vrot.lane.b32.xlu0 %v396, 112
    %v974 = vpop.permute.xlu0 %973
    %v977 = vsel %vm406, %v972, 0
    %979 = vmatprep.subr.mxu0 0.0
    %980 = vmatpush1.msra.mxu0 0.0
    %981 = vmatprep.subr.mxu0 0.0
    %982 = vmatpush1.msra.mxu0 0.0
    %983 = vmatprep.subr.mxu0 0.0
    %984 = vmatpush1.msra.mxu0 0.0
    %985 = vmatprep.subr.mxu0 0.0
    %986 = vmatpush1.msra.mxu0 0.0
    %987 = vmatprep.subr.mxu0 0.0
    %988 = vmatpush1.msra.mxu0 0.0
    %989 = vmatprep.subr.mxu0 0.0
    %990 = vmatpush1.msra.mxu0 0.0
    %991 = vmatprep.subr.mxu0 0.0
    %992 = vmatpush1.msra.mxu0 0.0
    %993 = vmatprep.subr.mxu0 0.0
    %994 = vmatpush1.msra.mxu0 0.0
    %995 = vmatprep.subr.mxu0 0.0
    %996 = vmatpush1.msra.mxu0 0.0
    %997 = vmatprep.subr.mxu0 0.0
    %998 = vmatpush1.msra.mxu0 0.0
    %999 = vmatprep.subr.mxu0 0.0
    %1000 = vmatpush1.msra.mxu0 0.0
    %1001 = vmatprep.subr.mxu0 0.0
    %1002 = vmatpush1.msra.mxu0 0.0
    %1003 = vmatprep.subr.mxu0 0.0
    %1004 = vmatpush1.msra.mxu0 0.0
    %1005 = vmatprep.subr.mxu0 0.0
    %1006 = vmatpush1.msra.mxu0 0.0
    %1007 = vmatprep.subr.mxu0 0.0
    %1008 = vmatpush1.msra.mxu0 0.0
    %1009 = vmatprep.subr.mxu0 0.0
    %1010 = vmatpush1.msra.mxu0 %v974
    %1011 = vmatprep.subr.mxu0 0.0
    %1012 = vmatpush2.msra.mxu0 0.0
    %1013 = vmatprep.subr.mxu0 0.0
    %1014 = vmatpush2.msra.mxu0 0.0
    %1015 = vmatprep.subr.mxu0 0.0
    %1016 = vmatpush2.msra.mxu0 0.0
    %1017 = vmatprep.subr.mxu0 0.0
    %1018 = vmatpush2.msra.mxu0 0.0
    %1019 = vmatprep.subr.mxu0 0.0
    %1020 = vmatpush2.msra.mxu0 0.0
    %1021 = vmatprep.subr.mxu0 0.0
    %1022 = vmatpush2.msra.mxu0 0.0
    %1023 = vmatprep.subr.mxu0 0.0
    %1024 = vmatpush2.msra.mxu0 0.0
    %1025 = vmatprep.subr.mxu0 0.0
    %1026 = vmatpush2.msra.mxu0 0.0
    %1027 = vmatprep.subr.mxu0 0.0
    %1028 = vmatpush2.msra.mxu0 0.0
    %1029 = vmatprep.subr.mxu0 0.0
    %1030 = vmatpush2.msra.mxu0 0.0
    %1031 = vmatprep.subr.mxu0 0.0
    %1032 = vmatpush2.msra.mxu0 0.0
    %1033 = vmatprep.subr.mxu0 0.0
    %1034 = vmatpush2.msra.mxu0 0.0
    %1035 = vmatprep.subr.mxu0 0.0
    %1036 = vmatpush2.msra.mxu0 0.0
    %1037 = vmatprep.subr.mxu0 0.0
    %1038 = vmatpush2.msra.mxu0 0.0
    %1039 = vmatprep.subr.mxu0 0.0
    %1040 = vmatpush2.msra.mxu0 0.0
    %1041 = vmatprep.subr.mxu0 0.0
    %1042 = vmatpush2.msra.mxu0 0.0
    %1043 = vmatprep.mubr.f32.mxu0 0.0
    %1044 = vmatmul.mubr.f32.gmra.mxu0 %v977
    %v1045 = vpop.f32.mrf.mxu0
    %v1046 = vadd.f32 0.0, %v1045
    %v1047 = vpop.f32.mrf.mxu0
    %1048 = vdwg.mxu0
    %v1049 = vld [vmem:[#allocation14 + $0x10] sm:$0xff]
    %v1051 = vsel %vm406, %v1046, 0
    %1053 = vmatprep.subr.mxu0 0.0
    %1054 = vmatpush1.msra.mxu0 0.0
    %1055 = vmatprep.subr.mxu0 0.0
    %1056 = vmatpush1.msra.mxu0 0.0
    %1057 = vmatprep.subr.mxu0 0.0
    %1058 = vmatpush1.msra.mxu0 0.0
    %1059 = vmatprep.subr.mxu0 0.0
    %1060 = vmatpush1.msra.mxu0 0.0
    %1061 = vmatprep.subr.mxu0 0.0
    %1062 = vmatpush1.msra.mxu0 0.0
    %1063 = vmatprep.subr.mxu0 0.0
    %1064 = vmatpush1.msra.mxu0 0.0
    %1065 = vmatprep.subr.mxu0 0.0
    %1066 = vmatpush1.msra.mxu0 0.0
    %1067 = vmatprep.subr.mxu0 0.0
    %1068 = vmatpush1.msra.mxu0 0.0
    %1069 = vmatprep.subr.mxu0 0.0
    %1070 = vmatpush1.msra.mxu0 0.0
    %1071 = vmatprep.subr.mxu0 0.0
    %1072 = vmatpush1.msra.mxu0 0.0
    %1073 = vmatprep.subr.mxu0 0.0
    %1074 = vmatpush1.msra.mxu0 0.0
    %1075 = vmatprep.subr.mxu0 0.0
    %1076 = vmatpush1.msra.mxu0 0.0
    %1077 = vmatprep.subr.mxu0 0.0
    %1078 = vmatpush1.msra.mxu0 0.0
    %1079 = vmatprep.subr.mxu0 0.0
    %1080 = vmatpush1.msra.mxu0 0.0
    %1081 = vmatprep.subr.mxu0 0.0
    %1082 = vmatpush1.msra.mxu0 0.0
    %1083 = vmatprep.subr.mxu0 0.0
    %1084 = vmatpush1.msra.mxu0 %v1049
    %1085 = vmatprep.subr.mxu0 0.0
    %1086 = vmatpush2.msra.mxu0 0.0
    %1087 = vmatprep.subr.mxu0 0.0
    %1088 = vmatpush2.msra.mxu0 0.0
    %1089 = vmatprep.subr.mxu0 0.0
    %1090 = vmatpush2.msra.mxu0 0.0
    %1091 = vmatprep.subr.mxu0 0.0
    %1092 = vmatpush2.msra.mxu0 0.0
    %1093 = vmatprep.subr.mxu0 0.0
    %1094 = vmatpush2.msra.mxu0 0.0
    %1095 = vmatprep.subr.mxu0 0.0
    %1096 = vmatpush2.msra.mxu0 0.0
    %1097 = vmatprep.subr.mxu0 0.0
    %1098 = vmatpush2.msra.mxu0 0.0
    %1099 = vmatprep.subr.mxu0 0.0
    %1100 = vmatpush2.msra.mxu0 0.0
    %1101 = vmatprep.subr.mxu0 0.0
    %1102 = vmatpush2.msra.mxu0 0.0
    %1103 = vmatprep.subr.mxu0 0.0
    %1104 = vmatpush2.msra.mxu0 0.0
    %1105 = vmatprep.subr.mxu0 0.0
    %1106 = vmatpush2.msra.mxu0 0.0
    %1107 = vmatprep.subr.mxu0 0.0
    %1108 = vmatpush2.msra.mxu0 0.0
    %1109 = vmatprep.subr.mxu0 0.0
    %1110 = vmatpush2.msra.mxu0 0.0
    %1111 = vmatprep.subr.mxu0 0.0
    %1112 = vmatpush2.msra.mxu0 0.0
    %1113 = vmatprep.subr.mxu0 0.0
    %1114 = vmatpush2.msra.mxu0 0.0
    %1115 = vmatprep.subr.mxu0 0.0
    %1116 = vmatpush2.msra.mxu0 0.0
    %1117 = vmatprep.mubr.f32.mxu0 0.0
    %1118 = vmatmul.mubr.f32.gmra.mxu0 %v1051
    %v1119 = vpop.f32.mrf.mxu0
    %v1120 = vadd.f32 0.0, %v1119
    %v1121 = vpop.f32.mrf.mxu0
    %1122 = vdwg.mxu0
    %v1123 = vadd.f32 %v880, %v1120
    %1124 = vrot.lane.b32.xlu0 %v222, 104
    %v1125 = vpop.permute.xlu0 %1124
    %1126 = vrot.lane.b32.xlu0 %v309, 104
    %v1127 = vpop.permute.xlu0 %1126
    %v1128 = vsel %vm406, %v1125, 0
    %v1130 = vsel %vm406, %v1127, 0
    %1132 = vmatprep.subr.mxu0 0.0
    %1133 = vmatpush1.xpose.msra.mxu0 0.0
    %1134 = vmatprep.subr.mxu0 0.0
    %1135 = vmatpush1.xpose.msra.mxu0 0.0
    %1136 = vmatprep.subr.mxu0 0.0
    %1137 = vmatpush1.xpose.msra.mxu0 0.0
    %1138 = vmatprep.subr.mxu0 0.0
    %1139 = vmatpush1.xpose.msra.mxu0 0.0
    %1140 = vmatprep.subr.mxu0 0.0
    %1141 = vmatpush1.xpose.msra.mxu0 0.0
    %1142 = vmatprep.subr.mxu0 0.0
    %1143 = vmatpush1.xpose.msra.mxu0 0.0
    %1144 = vmatprep.subr.mxu0 0.0
    %1145 = vmatpush1.xpose.msra.mxu0 0.0
    %1146 = vmatprep.subr.mxu0 0.0
    %1147 = vmatpush1.xpose.msra.mxu0 0.0
    %1148 = vmatprep.subr.mxu0 0.0
    %1149 = vmatpush1.xpose.msra.mxu0 0.0
    %1150 = vmatprep.subr.mxu0 0.0
    %1151 = vmatpush1.xpose.msra.mxu0 0.0
    %1152 = vmatprep.subr.mxu0 0.0
    %1153 = vmatpush1.xpose.msra.mxu0 0.0
    %1154 = vmatprep.subr.mxu0 0.0
    %1155 = vmatpush1.xpose.msra.mxu0 0.0
    %1156 = vmatprep.subr.mxu0 0.0
    %1157 = vmatpush1.xpose.msra.mxu0 0.0
    %1158 = vmatprep.subr.mxu0 0.0
    %1159 = vmatpush1.xpose.msra.mxu0 0.0
    %1160 = vmatprep.subr.mxu0 0.0
    %1161 = vmatpush1.xpose.msra.mxu0 0.0
    %1162 = vmatprep.subr.mxu0 0.0
    %1163 = vmatpush1.xpose.msra.mxu0 %v1130
    %1164 = vmatprep.subr.mxu0 0.0
    %1165 = vmatpush2.xpose.msra.mxu0 0.0
    %1166 = vmatprep.subr.mxu0 0.0
    %1167 = vmatpush2.xpose.msra.mxu0 0.0
    %1168 = vmatprep.subr.mxu0 0.0
    %1169 = vmatpush2.xpose.msra.mxu0 0.0
    %1170 = vmatprep.subr.mxu0 0.0
    %1171 = vmatpush2.xpose.msra.mxu0 0.0
    %1172 = vmatprep.subr.mxu0 0.0
    %1173 = vmatpush2.xpose.msra.mxu0 0.0
    %1174 = vmatprep.subr.mxu0 0.0
    %1175 = vmatpush2.xpose.msra.mxu0 0.0
    %1176 = vmatprep.subr.mxu0 0.0
    %1177 = vmatpush2.xpose.msra.mxu0 0.0
    %1178 = vmatprep.subr.mxu0 0.0
    %1179 = vmatpush2.xpose.msra.mxu0 0.0
    %1180 = vmatprep.subr.mxu0 0.0
    %1181 = vmatpush2.xpose.msra.mxu0 0.0
    %1182 = vmatprep.subr.mxu0 0.0
    %1183 = vmatpush2.xpose.msra.mxu0 0.0
    %1184 = vmatprep.subr.mxu0 0.0
    %1185 = vmatpush2.xpose.msra.mxu0 0.0
    %1186 = vmatprep.subr.mxu0 0.0
    %1187 = vmatpush2.xpose.msra.mxu0 0.0
    %1188 = vmatprep.subr.mxu0 0.0
    %1189 = vmatpush2.xpose.msra.mxu0 0.0
    %1190 = vmatprep.subr.mxu0 0.0
    %1191 = vmatpush2.xpose.msra.mxu0 0.0
    %1192 = vmatprep.subr.mxu0 0.0
    %1193 = vmatpush2.xpose.msra.mxu0 0.0
    %1194 = vmatprep.subr.mxu0 0.0
    %1195 = vmatpush2.xpose.msra.mxu0 0.0
    %1196 = vmatprep.mubr.f32.mxu0 0.0
    %1197 = vmatmul.mubr.f32.gmra.mxu0 %v1128
    %v1198 = vpop.f32.mrf.mxu0
    %v1199 = vadd.f32 %v405, %v1198
    %v1200 = vpop.f32.mrf.mxu0
    %1201 = vdwg.mxu0
    %v1202 = vmul.f32 %v1199, 0.17677669
    %v1203 = vsel %vm406, %v1202, -inf
    %1204 = vmax.xlane.f32.xlu0 %v1203
    %v1205 = vpop.xlane.xlu0 %1204
    %v1206 = vsub.f32 %v1202, %v1205
    %v1207 = vmul.f32 %v1206, 1.442695
    %v1208 = vpow.pop %v1207
    %v1209 = vsel %vm406, %v1208, 0.0
    %1210 = vadd.xlane.f32.xlu0 %v1209
    %v1211 = vpop.xlane.xlu0 %1210
    %v1212 = vrcp.pop %v1211
    %v1213 = vmul.f32 %v1208, %v1212
    %1214 = vrot.lane.b32.xlu0 %v396, 104
    %v1215 = vpop.permute.xlu0 %1214
    %v1218 = vsel %vm406, %v1213, 0
    %1220 = vmatprep.subr.mxu0 0.0
    %1221 = vmatpush1.msra.mxu0 0.0
    %1222 = vmatprep.subr.mxu0 0.0
    %1223 = vmatpush1.msra.mxu0 0.0
    %1224 = vmatprep.subr.mxu0 0.0
    %1225 = vmatpush1.msra.mxu0 0.0
    %1226 = vmatprep.subr.mxu0 0.0
    %1227 = vmatpush1.msra.mxu0 0.0
    %1228 = vmatprep.subr.mxu0 0.0
    %1229 = vmatpush1.msra.mxu0 0.0
    %1230 = vmatprep.subr.mxu0 0.0
    %1231 = vmatpush1.msra.mxu0 0.0
    %1232 = vmatprep.subr.mxu0 0.0
    %1233 = vmatpush1.msra.mxu0 0.0
    %1234 = vmatprep.subr.mxu0 0.0
    %1235 = vmatpush1.msra.mxu0 0.0
    %1236 = vmatprep.subr.mxu0 0.0
    %1237 = vmatpush1.msra.mxu0 0.0
    %1238 = vmatprep.subr.mxu0 0.0
    %1239 = vmatpush1.msra.mxu0 0.0
    %1240 = vmatprep.subr.mxu0 0.0
    %1241 = vmatpush1.msra.mxu0 0.0
    %1242 = vmatprep.subr.mxu0 0.0
    %1243 = vmatpush1.msra.mxu0 0.0
    %1244 = vmatprep.subr.mxu0 0.0
    %1245 = vmatpush1.msra.mxu0 0.0
    %1246 = vmatprep.subr.mxu0 0.0
    %1247 = vmatpush1.msra.mxu0 0.0
    %1248 = vmatprep.subr.mxu0 0.0
    %1249 = vmatpush1.msra.mxu0 0.0
    %1250 = vmatprep.subr.mxu0 0.0
    %1251 = vmatpush1.msra.mxu0 %v1215
    %1252 = vmatprep.subr.mxu0 0.0
    %1253 = vmatpush2.msra.mxu0 0.0
    %1254 = vmatprep.subr.mxu0 0.0
    %1255 = vmatpush2.msra.mxu0 0.0
    %1256 = vmatprep.subr.mxu0 0.0
    %1257 = vmatpush2.msra.mxu0 0.0
    %1258 = vmatprep.subr.mxu0 0.0
    %1259 = vmatpush2.msra.mxu0 0.0
    %1260 = vmatprep.subr.mxu0 0.0
    %1261 = vmatpush2.msra.mxu0 0.0
    %1262 = vmatprep.subr.mxu0 0.0
    %1263 = vmatpush2.msra.mxu0 0.0
    %1264 = vmatprep.subr.mxu0 0.0
    %1265 = vmatpush2.msra.mxu0 0.0
    %1266 = vmatprep.subr.mxu0 0.0
    %1267 = vmatpush2.msra.mxu0 0.0
    %1268 = vmatprep.subr.mxu0 0.0
    %1269 = vmatpush2.msra.mxu0 0.0
    %1270 = vmatprep.subr.mxu0 0.0
    %1271 = vmatpush2.msra.mxu0 0.0
    %1272 = vmatprep.subr.mxu0 0.0
    %1273 = vmatpush2.msra.mxu0 0.0
    %1274 = vmatprep.subr.mxu0 0.0
    %1275 = vmatpush2.msra.mxu0 0.0
    %1276 = vmatprep.subr.mxu0 0.0
    %1277 = vmatpush2.msra.mxu0 0.0
    %1278 = vmatprep.subr.mxu0 0.0
    %1279 = vmatpush2.msra.mxu0 0.0
    %1280 = vmatprep.subr.mxu0 0.0
    %1281 = vmatpush2.msra.mxu0 0.0
    %1282 = vmatprep.subr.mxu0 0.0
    %1283 = vmatpush2.msra.mxu0 0.0
    %1284 = vmatprep.mubr.f32.mxu0 0.0
    %1285 = vmatmul.mubr.f32.gmra.mxu0 %v1218
    %v1286 = vpop.f32.mrf.mxu0
    %v1287 = vadd.f32 0.0, %v1286
    %v1288 = vpop.f32.mrf.mxu0
    %1289 = vdwg.mxu0
    %v1290 = vld [vmem:[#allocation14 + $0x18] sm:$0xff]
    %v1292 = vsel %vm406, %v1287, 0
    %1294 = vmatprep.subr.mxu0 0.0
    %1295 = vmatpush1.msra.mxu0 0.0
    %1296 = vmatprep.subr.mxu0 0.0
    %1297 = vmatpush1.msra.mxu0 0.0
    %1298 = vmatprep.subr.mxu0 0.0
    %1299 = vmatpush1.msra.mxu0 0.0
    %1300 = vmatprep.subr.mxu0 0.0
    %1301 = vmatpush1.msra.mxu0 0.0
    %1302 = vmatprep.subr.mxu0 0.0
    %1303 = vmatpush1.msra.mxu0 0.0
    %1304 = vmatprep.subr.mxu0 0.0
    %1305 = vmatpush1.msra.mxu0 0.0
    %1306 = vmatprep.subr.mxu0 0.0
    %1307 = vmatpush1.msra.mxu0 0.0
    %1308 = vmatprep.subr.mxu0 0.0
    %1309 = vmatpush1.msra.mxu0 0.0
    %1310 = vmatprep.subr.mxu0 0.0
    %1311 = vmatpush1.msra.mxu0 0.0
    %1312 = vmatprep.subr.mxu0 0.0
    %1313 = vmatpush1.msra.mxu0 0.0
    %1314 = vmatprep.subr.mxu0 0.0
    %1315 = vmatpush1.msra.mxu0 0.0
    %1316 = vmatprep.subr.mxu0 0.0
    %1317 = vmatpush1.msra.mxu0 0.0
    %1318 = vmatprep.subr.mxu0 0.0
    %1319 = vmatpush1.msra.mxu0 0.0
    %1320 = vmatprep.subr.mxu0 0.0
    %1321 = vmatpush1.msra.mxu0 0.0
    %1322 = vmatprep.subr.mxu0 0.0
    %1323 = vmatpush1.msra.mxu0 0.0
    %1324 = vmatprep.subr.mxu0 0.0
    %1325 = vmatpush1.msra.mxu0 %v1290
    %1326 = vmatprep.subr.mxu0 0.0
    %1327 = vmatpush2.msra.mxu0 0.0
    %1328 = vmatprep.subr.mxu0 0.0
    %1329 = vmatpush2.msra.mxu0 0.0
    %1330 = vmatprep.subr.mxu0 0.0
    %1331 = vmatpush2.msra.mxu0 0.0
    %1332 = vmatprep.subr.mxu0 0.0
    %1333 = vmatpush2.msra.mxu0 0.0
    %1334 = vmatprep.subr.mxu0 0.0
    %1335 = vmatpush2.msra.mxu0 0.0
    %1336 = vmatprep.subr.mxu0 0.0
    %1337 = vmatpush2.msra.mxu0 0.0
    %1338 = vmatprep.subr.mxu0 0.0
    %1339 = vmatpush2.msra.mxu0 0.0
    %1340 = vmatprep.subr.mxu0 0.0
    %1341 = vmatpush2.msra.mxu0 0.0
    %1342 = vmatprep.subr.mxu0 0.0
    %1343 = vmatpush2.msra.mxu0 0.0
    %1344 = vmatprep.subr.mxu0 0.0
    %1345 = vmatpush2.msra.mxu0 0.0
    %1346 = vmatprep.subr.mxu0 0.0
    %1347 = vmatpush2.msra.mxu0 0.0
    %1348 = vmatprep.subr.mxu0 0.0
    %1349 = vmatpush2.msra.mxu0 0.0
    %1350 = vmatprep.subr.mxu0 0.0
    %1351 = vmatpush2.msra.mxu0 0.0
    %1352 = vmatprep.subr.mxu0 0.0
    %1353 = vmatpush2.msra.mxu0 0.0
    %1354 = vmatprep.subr.mxu0 0.0
    %1355 = vmatpush2.msra.mxu0 0.0
    %1356 = vmatprep.subr.mxu0 0.0
    %1357 = vmatpush2.msra.mxu0 0.0
    %1358 = vmatprep.mubr.f32.mxu0 0.0
    %1359 = vmatmul.mubr.f32.gmra.mxu0 %v1292
    %v1360 = vpop.f32.mrf.mxu0
    %v1361 = vadd.f32 0.0, %v1360
    %v1362 = vpop.f32.mrf.mxu0
    %1363 = vdwg.mxu0
    %v1364 = vadd.f32 %v1123, %v1361
    %v1366 = vlaneseq
    %v1367 = vshrl.u32 %v1366, 7
    %v1368 = vsub.s32 0, %v1367
    %v1369 = vrot.slane %v404, %v1368
    %v1371 = vadd.f32 %v1364, %v1369
    %1372 = vst.msk [vmem:[#allocation16] sm:$0xff] %vm148, %v1371
    %s1373 = scalar_lea.vmem [#allocation8], 8
    %v1374 = vld [vmem:[%s1373] sm:$0xff]
    %v1376 = vsel %vm406, %v227, 0
    %v1379 = vsel %vm406, %v314, 0
    %1381 = vmatprep.subr.mxu0 0.0
    %1382 = vmatpush1.xpose.msra.mxu0 0.0
    %1383 = vmatprep.subr.mxu0 0.0
    %1384 = vmatpush1.xpose.msra.mxu0 0.0
    %1385 = vmatprep.subr.mxu0 0.0
    %1386 = vmatpush1.xpose.msra.mxu0 0.0
    %1387 = vmatprep.subr.mxu0 0.0
    %1388 = vmatpush1.xpose.msra.mxu0 0.0
    %1389 = vmatprep.subr.mxu0 0.0
    %1390 = vmatpush1.xpose.msra.mxu0 0.0
    %1391 = vmatprep.subr.mxu0 0.0
    %1392 = vmatpush1.xpose.msra.mxu0 0.0
    %1393 = vmatprep.subr.mxu0 0.0
    %1394 = vmatpush1.xpose.msra.mxu0 0.0
    %1395 = vmatprep.subr.mxu0 0.0
    %1396 = vmatpush1.xpose.msra.mxu0 0.0
    %1397 = vmatprep.subr.mxu0 0.0
    %1398 = vmatpush1.xpose.msra.mxu0 0.0
    %1399 = vmatprep.subr.mxu0 0.0
    %1400 = vmatpush1.xpose.msra.mxu0 0.0
    %1401 = vmatprep.subr.mxu0 0.0
    %1402 = vmatpush1.xpose.msra.mxu0 0.0
    %1403 = vmatprep.subr.mxu0 0.0
    %1404 = vmatpush1.xpose.msra.mxu0 0.0
    %1405 = vmatprep.subr.mxu0 0.0
    %1406 = vmatpush1.xpose.msra.mxu0 0.0
    %1407 = vmatprep.subr.mxu0 0.0
    %1408 = vmatpush1.xpose.msra.mxu0 0.0
    %1409 = vmatprep.subr.mxu0 0.0
    %1410 = vmatpush1.xpose.msra.mxu0 0.0
    %1411 = vmatprep.subr.mxu0 0.0
    %1412 = vmatpush1.xpose.msra.mxu0 %v1379
    %1413 = vmatprep.subr.mxu0 0.0
    %1414 = vmatpush2.xpose.msra.mxu0 0.0
    %1415 = vmatprep.subr.mxu0 0.0
    %1416 = vmatpush2.xpose.msra.mxu0 0.0
    %1417 = vmatprep.subr.mxu0 0.0
    %1418 = vmatpush2.xpose.msra.mxu0 0.0
    %1419 = vmatprep.subr.mxu0 0.0
    %1420 = vmatpush2.xpose.msra.mxu0 0.0
    %1421 = vmatprep.subr.mxu0 0.0
    %1422 = vmatpush2.xpose.msra.mxu0 0.0
    %1423 = vmatprep.subr.mxu0 0.0
    %1424 = vmatpush2.xpose.msra.mxu0 0.0
    %1425 = vmatprep.subr.mxu0 0.0
    %1426 = vmatpush2.xpose.msra.mxu0 0.0
    %1427 = vmatprep.subr.mxu0 0.0
    %1428 = vmatpush2.xpose.msra.mxu0 0.0
    %1429 = vmatprep.subr.mxu0 0.0
    %1430 = vmatpush2.xpose.msra.mxu0 0.0
    %1431 = vmatprep.subr.mxu0 0.0
    %1432 = vmatpush2.xpose.msra.mxu0 0.0
    %1433 = vmatprep.subr.mxu0 0.0
    %1434 = vmatpush2.xpose.msra.mxu0 0.0
    %1435 = vmatprep.subr.mxu0 0.0
    %1436 = vmatpush2.xpose.msra.mxu0 0.0
    %1437 = vmatprep.subr.mxu0 0.0
    %1438 = vmatpush2.xpose.msra.mxu0 0.0
    %1439 = vmatprep.subr.mxu0 0.0
    %1440 = vmatpush2.xpose.msra.mxu0 0.0
    %1441 = vmatprep.subr.mxu0 0.0
    %1442 = vmatpush2.xpose.msra.mxu0 0.0
    %1443 = vmatprep.subr.mxu0 0.0
    %1444 = vmatpush2.xpose.msra.mxu0 0.0
    %1445 = vmatprep.mubr.f32.mxu0 0.0
    %1446 = vmatmul.mubr.f32.gmra.mxu0 %v1376
    %v1447 = vpop.f32.mrf.mxu0
    %v1448 = vadd.f32 %v1374, %v1447
    %v1449 = vpop.f32.mrf.mxu0
    %1450 = vdwg.mxu0
    %v1451 = vmul.f32 %v1448, 0.17677669
    %v1452 = vsel %vm406, %v1451, -inf
    %1453 = vmax.xlane.f32.xlu0 %v1452
    %v1454 = vpop.xlane.xlu0 %1453
    %v1455 = vsub.f32 %v1451, %v1454
    %v1456 = vmul.f32 %v1455, 1.442695
    %v1457 = vpow.pop %v1456
    %v1458 = vsel %vm406, %v1457, 0.0
    %1459 = vadd.xlane.f32.xlu0 %v1458
    %v1460 = vpop.xlane.xlu0 %1459
    %v1461 = vrcp.pop %v1460
    %v1462 = vmul.f32 %v1457, %v1461
    %v1464 = vsel %vm406, %v1462, 0
    %1466 = vmatprep.subr.mxu0 0.0
    %1467 = vmatpush1.msra.mxu0 0.0
    %1468 = vmatprep.subr.mxu0 0.0
    %1469 = vmatpush1.msra.mxu0 0.0
    %1470 = vmatprep.subr.mxu0 0.0
    %1471 = vmatpush1.msra.mxu0 0.0
    %1472 = vmatprep.subr.mxu0 0.0
    %1473 = vmatpush1.msra.mxu0 0.0
    %1474 = vmatprep.subr.mxu0 0.0
    %1475 = vmatpush1.msra.mxu0 0.0
    %1476 = vmatprep.subr.mxu0 0.0
    %1477 = vmatpush1.msra.mxu0 0.0
    %1478 = vmatprep.subr.mxu0 0.0
    %1479 = vmatpush1.msra.mxu0 0.0
    %1480 = vmatprep.subr.mxu0 0.0
    %1481 = vmatpush1.msra.mxu0 0.0
    %1482 = vmatprep.subr.mxu0 0.0
    %1483 = vmatpush1.msra.mxu0 0.0
    %1484 = vmatprep.subr.mxu0 0.0
    %1485 = vmatpush1.msra.mxu0 0.0
    %1486 = vmatprep.subr.mxu0 0.0
    %1487 = vmatpush1.msra.mxu0 0.0
    %1488 = vmatprep.subr.mxu0 0.0
    %1489 = vmatpush1.msra.mxu0 0.0
    %1490 = vmatprep.subr.mxu0 0.0
    %1491 = vmatpush1.msra.mxu0 0.0
    %1492 = vmatprep.subr.mxu0 0.0
    %1493 = vmatpush1.msra.mxu0 0.0
    %1494 = vmatprep.subr.mxu0 0.0
    %1495 = vmatpush1.msra.mxu0 0.0
    %1496 = vmatprep.subr.mxu0 0.0
    %1497 = vmatpush1.msra.mxu0 %v401
    %1498 = vmatprep.subr.mxu0 0.0
    %1499 = vmatpush2.msra.mxu0 0.0
    %1500 = vmatprep.subr.mxu0 0.0
    %1501 = vmatpush2.msra.mxu0 0.0
    %1502 = vmatprep.subr.mxu0 0.0
    %1503 = vmatpush2.msra.mxu0 0.0
    %1504 = vmatprep.subr.mxu0 0.0
    %1505 = vmatpush2.msra.mxu0 0.0
    %1506 = vmatprep.subr.mxu0 0.0
    %1507 = vmatpush2.msra.mxu0 0.0
    %1508 = vmatprep.subr.mxu0 0.0
    %1509 = vmatpush2.msra.mxu0 0.0
    %1510 = vmatprep.subr.mxu0 0.0
    %1511 = vmatpush2.msra.mxu0 0.0
    %1512 = vmatprep.subr.mxu0 0.0
    %1513 = vmatpush2.msra.mxu0 0.0
    %1514 = vmatprep.subr.mxu0 0.0
    %1515 = vmatpush2.msra.mxu0 0.0
    %1516 = vmatprep.subr.mxu0 0.0
    %1517 = vmatpush2.msra.mxu0 0.0
    %1518 = vmatprep.subr.mxu0 0.0
    %1519 = vmatpush2.msra.mxu0 0.0
    %1520 = vmatprep.subr.mxu0 0.0
    %1521 = vmatpush2.msra.mxu0 0.0
    %1522 = vmatprep.subr.mxu0 0.0
    %1523 = vmatpush2.msra.mxu0 0.0
    %1524 = vmatprep.subr.mxu0 0.0
    %1525 = vmatpush2.msra.mxu0 0.0
    %1526 = vmatprep.subr.mxu0 0.0
    %1527 = vmatpush2.msra.mxu0 0.0
    %1528 = vmatprep.subr.mxu0 0.0
    %1529 = vmatpush2.msra.mxu0 0.0
    %1530 = vmatprep.mubr.f32.mxu0 0.0
    %1531 = vmatmul.mubr.f32.gmra.mxu0 %v1464
    %v1532 = vpop.f32.mrf.mxu0
    %v1533 = vadd.f32 0.0, %v1532
    %v1534 = vpop.f32.mrf.mxu0
    %1535 = vdwg.mxu0
    %v1536 = vld [vmem:[#allocation14] sm:$0xff]
    %1537 = vrot.lane.b32.xlu0 %v227, 120
    %v1538 = vpop.permute.xlu0 %1537
    %1539 = vrot.lane.b32.xlu0 %v314, 120
    %v1540 = vpop.permute.xlu0 %1539
    %v1541 = vsel %vm406, %v1538, 0
    %v1543 = vsel %vm406, %v1540, 0
    %1545 = vmatprep.subr.mxu0 0.0
    %1546 = vmatpush1.xpose.msra.mxu0 0.0
    %1547 = vmatprep.subr.mxu0 0.0
    %1548 = vmatpush1.xpose.msra.mxu0 0.0
    %1549 = vmatprep.subr.mxu0 0.0
    %1550 = vmatpush1.xpose.msra.mxu0 0.0
    %1551 = vmatprep.subr.mxu0 0.0
    %1552 = vmatpush1.xpose.msra.mxu0 0.0
    %1553 = vmatprep.subr.mxu0 0.0
    %1554 = vmatpush1.xpose.msra.mxu0 0.0
    %1555 = vmatprep.subr.mxu0 0.0
    %1556 = vmatpush1.xpose.msra.mxu0 0.0
    %1557 = vmatprep.subr.mxu0 0.0
    %1558 = vmatpush1.xpose.msra.mxu0 0.0
    %1559 = vmatprep.subr.mxu0 0.0
    %1560 = vmatpush1.xpose.msra.mxu0 0.0
    %1561 = vmatprep.subr.mxu0 0.0
    %1562 = vmatpush1.xpose.msra.mxu0 0.0
    %1563 = vmatprep.subr.mxu0 0.0
    %1564 = vmatpush1.xpose.msra.mxu0 0.0
    %1565 = vmatprep.subr.mxu0 0.0
    %1566 = vmatpush1.xpose.msra.mxu0 0.0
    %1567 = vmatprep.subr.mxu0 0.0
    %1568 = vmatpush1.xpose.msra.mxu0 0.0
    %1569 = vmatprep.subr.mxu0 0.0
    %1570 = vmatpush1.xpose.msra.mxu0 0.0
    %1571 = vmatprep.subr.mxu0 0.0
    %1572 = vmatpush1.xpose.msra.mxu0 0.0
    %1573 = vmatprep.subr.mxu0 0.0
    %1574 = vmatpush1.xpose.msra.mxu0 0.0
    %1575 = vmatprep.subr.mxu0 0.0
    %1576 = vmatpush1.xpose.msra.mxu0 %v1543
    %1577 = vmatprep.subr.mxu0 0.0
    %1578 = vmatpush2.xpose.msra.mxu0 0.0
    %1579 = vmatprep.subr.mxu0 0.0
    %1580 = vmatpush2.xpose.msra.mxu0 0.0
    %1581 = vmatprep.subr.mxu0 0.0
    %1582 = vmatpush2.xpose.msra.mxu0 0.0
    %1583 = vmatprep.subr.mxu0 0.0
    %1584 = vmatpush2.xpose.msra.mxu0 0.0
    %1585 = vmatprep.subr.mxu0 0.0
    %1586 = vmatpush2.xpose.msra.mxu0 0.0
    %1587 = vmatprep.subr.mxu0 0.0
    %1588 = vmatpush2.xpose.msra.mxu0 0.0
    %1589 = vmatprep.subr.mxu0 0.0
    %1590 = vmatpush2.xpose.msra.mxu0 0.0
    %1591 = vmatprep.subr.mxu0 0.0
    %1592 = vmatpush2.xpose.msra.mxu0 0.0
    %1593 = vmatprep.subr.mxu0 0.0
    %1594 = vmatpush2.xpose.msra.mxu0 0.0
    %1595 = vmatprep.subr.mxu0 0.0
    %1596 = vmatpush2.xpose.msra.mxu0 0.0
    %1597 = vmatprep.subr.mxu0 0.0
    %1598 = vmatpush2.xpose.msra.mxu0 0.0
    %1599 = vmatprep.subr.mxu0 0.0
    %1600 = vmatpush2.xpose.msra.mxu0 0.0
    %1601 = vmatprep.subr.mxu0 0.0
    %1602 = vmatpush2.xpose.msra.mxu0 0.0
    %1603 = vmatprep.subr.mxu0 0.0
    %1604 = vmatpush2.xpose.msra.mxu0 0.0
    %1605 = vmatprep.subr.mxu0 0.0
    %1606 = vmatpush2.xpose.msra.mxu0 0.0
    %1607 = vmatprep.subr.mxu0 0.0
    %1608 = vmatpush2.xpose.msra.mxu0 0.0
    %1609 = vmatprep.mubr.f32.mxu0 0.0
    %1610 = vmatmul.mubr.f32.gmra.mxu0 %v1541
    %v1611 = vpop.f32.mrf.mxu0
    %v1612 = vadd.f32 %v1374, %v1611
    %v1613 = vpop.f32.mrf.mxu0
    %1614 = vdwg.mxu0
    %v1615 = vmul.f32 %v1612, 0.17677669
    %v1616 = vsel %vm406, %v1615, -inf
    %1617 = vmax.xlane.f32.xlu0 %v1616
    %v1618 = vpop.xlane.xlu0 %1617
    %v1619 = vsub.f32 %v1615, %v1618
    %v1620 = vmul.f32 %v1619, 1.442695
    %v1621 = vpow.pop %v1620
    %v1622 = vsel %vm406, %v1621, 0.0
    %1623 = vadd.xlane.f32.xlu0 %v1622
    %v1624 = vpop.xlane.xlu0 %1623
    %v1625 = vrcp.pop %v1624
    %v1626 = vmul.f32 %v1621, %v1625
    %1628 = vrot.lane.b32.xlu0 %v401, 120
    %v1629 = vpop.permute.xlu0 %1628
    %v1632 = vsel %vm406, %v1626, 0
    %1634 = vmatprep.subr.mxu0 0.0
    %1635 = vmatpush1.msra.mxu0 0.0
    %1636 = vmatprep.subr.mxu0 0.0
    %1637 = vmatpush1.msra.mxu0 0.0
    %1638 = vmatprep.subr.mxu0 0.0
    %1639 = vmatpush1.msra.mxu0 0.0
    %1640 = vmatprep.subr.mxu0 0.0
    %1641 = vmatpush1.msra.mxu0 0.0
    %1642 = vmatprep.subr.mxu0 0.0
    %1643 = vmatpush1.msra.mxu0 0.0
    %1644 = vmatprep.subr.mxu0 0.0
    %1645 = vmatpush1.msra.mxu0 0.0
    %1646 = vmatprep.subr.mxu0 0.0
    %1647 = vmatpush1.msra.mxu0 0.0
    %1648 = vmatprep.subr.mxu0 0.0
    %1649 = vmatpush1.msra.mxu0 0.0
    %1650 = vmatprep.subr.mxu0 0.0
    %1651 = vmatpush1.msra.mxu0 0.0
    %1652 = vmatprep.subr.mxu0 0.0
    %1653 = vmatpush1.msra.mxu0 0.0
    %1654 = vmatprep.subr.mxu0 0.0
    %1655 = vmatpush1.msra.mxu0 0.0
    %1656 = vmatprep.subr.mxu0 0.0
    %1657 = vmatpush1.msra.mxu0 0.0
    %1658 = vmatprep.subr.mxu0 0.0
    %1659 = vmatpush1.msra.mxu0 0.0
    %1660 = vmatprep.subr.mxu0 0.0
    %1661 = vmatpush1.msra.mxu0 0.0
    %1662 = vmatprep.subr.mxu0 0.0
    %1663 = vmatpush1.msra.mxu0 0.0
    %1664 = vmatprep.subr.mxu0 0.0
    %1665 = vmatpush1.msra.mxu0 %v1629
    %1666 = vmatprep.subr.mxu0 0.0
    %1667 = vmatpush2.msra.mxu0 0.0
    %1668 = vmatprep.subr.mxu0 0.0
    %1669 = vmatpush2.msra.mxu0 0.0
    %1670 = vmatprep.subr.mxu0 0.0
    %1671 = vmatpush2.msra.mxu0 0.0
    %1672 = vmatprep.subr.mxu0 0.0
    %1673 = vmatpush2.msra.mxu0 0.0
    %1674 = vmatprep.subr.mxu0 0.0
    %1675 = vmatpush2.msra.mxu0 0.0
    %1676 = vmatprep.subr.mxu0 0.0
    %1677 = vmatpush2.msra.mxu0 0.0
    %1678 = vmatprep.subr.mxu0 0.0
    %1679 = vmatpush2.msra.mxu0 0.0
    %1680 = vmatprep.subr.mxu0 0.0
    %1681 = vmatpush2.msra.mxu0 0.0
    %1682 = vmatprep.subr.mxu0 0.0
    %1683 = vmatpush2.msra.mxu0 0.0
    %1684 = vmatprep.subr.mxu0 0.0
    %1685 = vmatpush2.msra.mxu0 0.0
    %1686 = vmatprep.subr.mxu0 0.0
    %1687 = vmatpush2.msra.mxu0 0.0
    %1688 = vmatprep.subr.mxu0 0.0
    %1689 = vmatpush2.msra.mxu0 0.0
    %1690 = vmatprep.subr.mxu0 0.0
    %1691 = vmatpush2.msra.mxu0 0.0
    %1692 = vmatprep.subr.mxu0 0.0
    %1693 = vmatpush2.msra.mxu0 0.0
    %1694 = vmatprep.subr.mxu0 0.0
    %1695 = vmatpush2.msra.mxu0 0.0
    %1696 = vmatprep.subr.mxu0 0.0
    %1697 = vmatpush2.msra.mxu0 0.0
    %1698 = vmatprep.mubr.f32.mxu0 0.0
    %1699 = vmatmul.mubr.f32.gmra.mxu0 %v1632
    %v1700 = vpop.f32.mrf.mxu0
    %v1701 = vadd.f32 0.0, %v1700
    %v1702 = vpop.f32.mrf.mxu0
    %1703 = vdwg.mxu0
    %v1704 = vld [vmem:[#allocation14 + $0x8] sm:$0xff]
    %v1706 = vsel %vm406, %v1701, 0
    %1708 = vmatprep.subr.mxu0 0.0
    %1709 = vmatpush1.msra.mxu0 0.0
    %1710 = vmatprep.subr.mxu0 0.0
    %1711 = vmatpush1.msra.mxu0 0.0
    %1712 = vmatprep.subr.mxu0 0.0
    %1713 = vmatpush1.msra.mxu0 0.0
    %1714 = vmatprep.subr.mxu0 0.0
    %1715 = vmatpush1.msra.mxu0 0.0
    %1716 = vmatprep.subr.mxu0 0.0
    %1717 = vmatpush1.msra.mxu0 0.0
    %1718 = vmatprep.subr.mxu0 0.0
    %1719 = vmatpush1.msra.mxu0 0.0
    %1720 = vmatprep.subr.mxu0 0.0
    %1721 = vmatpush1.msra.mxu0 0.0
    %1722 = vmatprep.subr.mxu0 0.0
    %1723 = vmatpush1.msra.mxu0 0.0
    %1724 = vmatprep.subr.mxu0 0.0
    %1725 = vmatpush1.msra.mxu0 0.0
    %1726 = vmatprep.subr.mxu0 0.0
    %1727 = vmatpush1.msra.mxu0 0.0
    %1728 = vmatprep.subr.mxu0 0.0
    %1729 = vmatpush1.msra.mxu0 0.0
    %1730 = vmatprep.subr.mxu0 0.0
    %1731 = vmatpush1.msra.mxu0 0.0
    %1732 = vmatprep.subr.mxu0 0.0
    %1733 = vmatpush1.msra.mxu0 0.0
    %1734 = vmatprep.subr.mxu0 0.0
    %1735 = vmatpush1.msra.mxu0 0.0
    %1736 = vmatprep.subr.mxu0 0.0
    %1737 = vmatpush1.msra.mxu0 0.0
    %1738 = vmatprep.subr.mxu0 0.0
    %1739 = vmatpush1.msra.mxu0 %v1704
    %1740 = vmatprep.subr.mxu0 0.0
    %1741 = vmatpush2.msra.mxu0 0.0
    %1742 = vmatprep.subr.mxu0 0.0
    %1743 = vmatpush2.msra.mxu0 0.0
    %1744 = vmatprep.subr.mxu0 0.0
    %1745 = vmatpush2.msra.mxu0 0.0
    %1746 = vmatprep.subr.mxu0 0.0
    %1747 = vmatpush2.msra.mxu0 0.0
    %1748 = vmatprep.subr.mxu0 0.0
    %1749 = vmatpush2.msra.mxu0 0.0
    %1750 = vmatprep.subr.mxu0 0.0
    %1751 = vmatpush2.msra.mxu0 0.0
    %1752 = vmatprep.subr.mxu0 0.0
    %1753 = vmatpush2.msra.mxu0 0.0
    %1754 = vmatprep.subr.mxu0 0.0
    %1755 = vmatpush2.msra.mxu0 0.0
    %1756 = vmatprep.subr.mxu0 0.0
    %1757 = vmatpush2.msra.mxu0 0.0
    %1758 = vmatprep.subr.mxu0 0.0
    %1759 = vmatpush2.msra.mxu0 0.0
    %1760 = vmatprep.subr.mxu0 0.0
    %1761 = vmatpush2.msra.mxu0 0.0
    %1762 = vmatprep.subr.mxu0 0.0
    %1763 = vmatpush2.msra.mxu0 0.0
    %1764 = vmatprep.subr.mxu0 0.0
    %1765 = vmatpush2.msra.mxu0 0.0
    %1766 = vmatprep.subr.mxu0 0.0
    %1767 = vmatpush2.msra.mxu0 0.0
    %1768 = vmatprep.subr.mxu0 0.0
    %1769 = vmatpush2.msra.mxu0 0.0
    %1770 = vmatprep.subr.mxu0 0.0
    %1771 = vmatpush2.msra.mxu0 0.0
    %1772 = vmatprep.mubr.f32.mxu0 0.0
    %1773 = vmatmul.mubr.f32.gmra.mxu0 %v1706
    %v1774 = vpop.f32.mrf.mxu0
    %v1775 = vadd.f32 0.0, %v1774
    %v1776 = vpop.f32.mrf.mxu0
    %1777 = vdwg.mxu0
    %v1779 = vsel %vm406, %v1533, 0
    %1781 = vmatprep.subr.mxu0 0.0
    %1782 = vmatpush1.msra.mxu0 0.0
    %1783 = vmatprep.subr.mxu0 0.0
    %1784 = vmatpush1.msra.mxu0 0.0
    %1785 = vmatprep.subr.mxu0 0.0
    %1786 = vmatpush1.msra.mxu0 0.0
    %1787 = vmatprep.subr.mxu0 0.0
    %1788 = vmatpush1.msra.mxu0 0.0
    %1789 = vmatprep.subr.mxu0 0.0
    %1790 = vmatpush1.msra.mxu0 0.0
    %1791 = vmatprep.subr.mxu0 0.0
    %1792 = vmatpush1.msra.mxu0 0.0
    %1793 = vmatprep.subr.mxu0 0.0
    %1794 = vmatpush1.msra.mxu0 0.0
    %1795 = vmatprep.subr.mxu0 0.0
    %1796 = vmatpush1.msra.mxu0 0.0
    %1797 = vmatprep.subr.mxu0 0.0
    %1798 = vmatpush1.msra.mxu0 0.0
    %1799 = vmatprep.subr.mxu0 0.0
    %1800 = vmatpush1.msra.mxu0 0.0
    %1801 = vmatprep.subr.mxu0 0.0
    %1802 = vmatpush1.msra.mxu0 0.0
    %1803 = vmatprep.subr.mxu0 0.0
    %1804 = vmatpush1.msra.mxu0 0.0
    %1805 = vmatprep.subr.mxu0 0.0
    %1806 = vmatpush1.msra.mxu0 0.0
    %1807 = vmatprep.subr.mxu0 0.0
    %1808 = vmatpush1.msra.mxu0 0.0
    %1809 = vmatprep.subr.mxu0 0.0
    %1810 = vmatpush1.msra.mxu0 0.0
    %1811 = vmatprep.subr.mxu0 0.0
    %1812 = vmatpush1.msra.mxu0 %v1536
    %1813 = vmatprep.subr.mxu0 0.0
    %1814 = vmatpush2.msra.mxu0 0.0
    %1815 = vmatprep.subr.mxu0 0.0
    %1816 = vmatpush2.msra.mxu0 0.0
    %1817 = vmatprep.subr.mxu0 0.0
    %1818 = vmatpush2.msra.mxu0 0.0
    %1819 = vmatprep.subr.mxu0 0.0
    %1820 = vmatpush2.msra.mxu0 0.0
    %1821 = vmatprep.subr.mxu0 0.0
    %1822 = vmatpush2.msra.mxu0 0.0
    %1823 = vmatprep.subr.mxu0 0.0
    %1824 = vmatpush2.msra.mxu0 0.0
    %1825 = vmatprep.subr.mxu0 0.0
    %1826 = vmatpush2.msra.mxu0 0.0
    %1827 = vmatprep.subr.mxu0 0.0
    %1828 = vmatpush2.msra.mxu0 0.0
    %1829 = vmatprep.subr.mxu0 0.0
    %1830 = vmatpush2.msra.mxu0 0.0
    %1831 = vmatprep.subr.mxu0 0.0
    %1832 = vmatpush2.msra.mxu0 0.0
    %1833 = vmatprep.subr.mxu0 0.0
    %1834 = vmatpush2.msra.mxu0 0.0
    %1835 = vmatprep.subr.mxu0 0.0
    %1836 = vmatpush2.msra.mxu0 0.0
    %1837 = vmatprep.subr.mxu0 0.0
    %1838 = vmatpush2.msra.mxu0 0.0
    %1839 = vmatprep.subr.mxu0 0.0
    %1840 = vmatpush2.msra.mxu0 0.0
    %1841 = vmatprep.subr.mxu0 0.0
    %1842 = vmatpush2.msra.mxu0 0.0
    %1843 = vmatprep.subr.mxu0 0.0
    %1844 = vmatpush2.msra.mxu0 0.0
    %1845 = vmatprep.mubr.f32.mxu0 0.0
    %1846 = vmatmul.mubr.f32.gmra.mxu0 %v1779
    %v1847 = vpop.f32.mrf.mxu0
    %v1848 = vadd.f32 %v1775, %v1847
    %v1849 = vpop.f32.mrf.mxu0
    %1850 = vdwg.mxu0
    %1851 = vrot.lane.b32.xlu0 %v227, 112
    %v1852 = vpop.permute.xlu0 %1851
    %1853 = vrot.lane.b32.xlu0 %v314, 112
    %v1854 = vpop.permute.xlu0 %1853
    %v1855 = vsel %vm406, %v1852, 0
    %v1857 = vsel %vm406, %v1854, 0
    %1859 = vmatprep.subr.mxu0 0.0
    %1860 = vmatpush1.xpose.msra.mxu0 0.0
    %1861 = vmatprep.subr.mxu0 0.0
    %1862 = vmatpush1.xpose.msra.mxu0 0.0
    %1863 = vmatprep.subr.mxu0 0.0
    %1864 = vmatpush1.xpose.msra.mxu0 0.0
    %1865 = vmatprep.subr.mxu0 0.0
    %1866 = vmatpush1.xpose.msra.mxu0 0.0
    %1867 = vmatprep.subr.mxu0 0.0
    %1868 = vmatpush1.xpose.msra.mxu0 0.0
    %1869 = vmatprep.subr.mxu0 0.0
    %1870 = vmatpush1.xpose.msra.mxu0 0.0
    %1871 = vmatprep.subr.mxu0 0.0
    %1872 = vmatpush1.xpose.msra.mxu0 0.0
    %1873 = vmatprep.subr.mxu0 0.0
    %1874 = vmatpush1.xpose.msra.mxu0 0.0
    %1875 = vmatprep.subr.mxu0 0.0
    %1876 = vmatpush1.xpose.msra.mxu0 0.0
    %1877 = vmatprep.subr.mxu0 0.0
    %1878 = vmatpush1.xpose.msra.mxu0 0.0
    %1879 = vmatprep.subr.mxu0 0.0
    %1880 = vmatpush1.xpose.msra.mxu0 0.0
    %1881 = vmatprep.subr.mxu0 0.0
    %1882 = vmatpush1.xpose.msra.mxu0 0.0
    %1883 = vmatprep.subr.mxu0 0.0
    %1884 = vmatpush1.xpose.msra.mxu0 0.0
    %1885 = vmatprep.subr.mxu0 0.0
    %1886 = vmatpush1.xpose.msra.mxu0 0.0
    %1887 = vmatprep.subr.mxu0 0.0
    %1888 = vmatpush1.xpose.msra.mxu0 0.0
    %1889 = vmatprep.subr.mxu0 0.0
    %1890 = vmatpush1.xpose.msra.mxu0 %v1857
    %1891 = vmatprep.subr.mxu0 0.0
    %1892 = vmatpush2.xpose.msra.mxu0 0.0
    %1893 = vmatprep.subr.mxu0 0.0
    %1894 = vmatpush2.xpose.msra.mxu0 0.0
    %1895 = vmatprep.subr.mxu0 0.0
    %1896 = vmatpush2.xpose.msra.mxu0 0.0
    %1897 = vmatprep.subr.mxu0 0.0
    %1898 = vmatpush2.xpose.msra.mxu0 0.0
    %1899 = vmatprep.subr.mxu0 0.0
    %1900 = vmatpush2.xpose.msra.mxu0 0.0
    %1901 = vmatprep.subr.mxu0 0.0
    %1902 = vmatpush2.xpose.msra.mxu0 0.0
    %1903 = vmatprep.subr.mxu0 0.0
    %1904 = vmatpush2.xpose.msra.mxu0 0.0
    %1905 = vmatprep.subr.mxu0 0.0
    %1906 = vmatpush2.xpose.msra.mxu0 0.0
    %1907 = vmatprep.subr.mxu0 0.0
    %1908 = vmatpush2.xpose.msra.mxu0 0.0
    %1909 = vmatprep.subr.mxu0 0.0
    %1910 = vmatpush2.xpose.msra.mxu0 0.0
    %1911 = vmatprep.subr.mxu0 0.0
    %1912 = vmatpush2.xpose.msra.mxu0 0.0
    %1913 = vmatprep.subr.mxu0 0.0
    %1914 = vmatpush2.xpose.msra.mxu0 0.0
    %1915 = vmatprep.subr.mxu0 0.0
    %1916 = vmatpush2.xpose.msra.mxu0 0.0
    %1917 = vmatprep.subr.mxu0 0.0
    %1918 = vmatpush2.xpose.msra.mxu0 0.0
    %1919 = vmatprep.subr.mxu0 0.0
    %1920 = vmatpush2.xpose.msra.mxu0 0.0
    %1921 = vmatprep.subr.mxu0 0.0
    %1922 = vmatpush2.xpose.msra.mxu0 0.0
    %1923 = vmatprep.mubr.f32.mxu0 0.0
    %1924 = vmatmul.mubr.f32.gmra.mxu0 %v1855
    %v1925 = vpop.f32.mrf.mxu0
    %v1926 = vadd.f32 %v1374, %v1925
    %v1927 = vpop.f32.mrf.mxu0
    %1928 = vdwg.mxu0
    %v1929 = vmul.f32 %v1926, 0.17677669
    %v1930 = vsel %vm406, %v1929, -inf
    %1931 = vmax.xlane.f32.xlu0 %v1930
    %v1932 = vpop.xlane.xlu0 %1931
    %v1933 = vsub.f32 %v1929, %v1932
    %v1934 = vmul.f32 %v1933, 1.442695
    %v1935 = vpow.pop %v1934
    %v1936 = vsel %vm406, %v1935, 0.0
    %1937 = vadd.xlane.f32.xlu0 %v1936
    %v1938 = vpop.xlane.xlu0 %1937
    %v1939 = vrcp.pop %v1938
    %v1940 = vmul.f32 %v1935, %v1939
    %1941 = vrot.lane.b32.xlu0 %v401, 112
    %v1942 = vpop.permute.xlu0 %1941
    %v1945 = vsel %vm406, %v1940, 0
    %1947 = vmatprep.subr.mxu0 0.0
    %1948 = vmatpush1.msra.mxu0 0.0
    %1949 = vmatprep.subr.mxu0 0.0
    %1950 = vmatpush1.msra.mxu0 0.0
    %1951 = vmatprep.subr.mxu0 0.0
    %1952 = vmatpush1.msra.mxu0 0.0
    %1953 = vmatprep.subr.mxu0 0.0
    %1954 = vmatpush1.msra.mxu0 0.0
    %1955 = vmatprep.subr.mxu0 0.0
    %1956 = vmatpush1.msra.mxu0 0.0
    %1957 = vmatprep.subr.mxu0 0.0
    %1958 = vmatpush1.msra.mxu0 0.0
    %1959 = vmatprep.subr.mxu0 0.0
    %1960 = vmatpush1.msra.mxu0 0.0
    %1961 = vmatprep.subr.mxu0 0.0
    %1962 = vmatpush1.msra.mxu0 0.0
    %1963 = vmatprep.subr.mxu0 0.0
    %1964 = vmatpush1.msra.mxu0 0.0
    %1965 = vmatprep.subr.mxu0 0.0
    %1966 = vmatpush1.msra.mxu0 0.0
    %1967 = vmatprep.subr.mxu0 0.0
    %1968 = vmatpush1.msra.mxu0 0.0
    %1969 = vmatprep.subr.mxu0 0.0
    %1970 = vmatpush1.msra.mxu0 0.0
    %1971 = vmatprep.subr.mxu0 0.0
    %1972 = vmatpush1.msra.mxu0 0.0
    %1973 = vmatprep.subr.mxu0 0.0
    %1974 = vmatpush1.msra.mxu0 0.0
    %1975 = vmatprep.subr.mxu0 0.0
    %1976 = vmatpush1.msra.mxu0 0.0
    %1977 = vmatprep.subr.mxu0 0.0
    %1978 = vmatpush1.msra.mxu0 %v1942
    %1979 = vmatprep.subr.mxu0 0.0
    %1980 = vmatpush2.msra.mxu0 0.0
    %1981 = vmatprep.subr.mxu0 0.0
    %1982 = vmatpush2.msra.mxu0 0.0
    %1983 = vmatprep.subr.mxu0 0.0
    %1984 = vmatpush2.msra.mxu0 0.0
    %1985 = vmatprep.subr.mxu0 0.0
    %1986 = vmatpush2.msra.mxu0 0.0
    %1987 = vmatprep.subr.mxu0 0.0
    %1988 = vmatpush2.msra.mxu0 0.0
    %1989 = vmatprep.subr.mxu0 0.0
    %1990 = vmatpush2.msra.mxu0 0.0
    %1991 = vmatprep.subr.mxu0 0.0
    %1992 = vmatpush2.msra.mxu0 0.0
    %1993 = vmatprep.subr.mxu0 0.0
    %1994 = vmatpush2.msra.mxu0 0.0
    %1995 = vmatprep.subr.mxu0 0.0
    %1996 = vmatpush2.msra.mxu0 0.0
    %1997 = vmatprep.subr.mxu0 0.0
    %1998 = vmatpush2.msra.mxu0 0.0
    %1999 = vmatprep.subr.mxu0 0.0
    %2000 = vmatpush2.msra.mxu0 0.0
    %2001 = vmatprep.subr.mxu0 0.0
    %2002 = vmatpush2.msra.mxu0 0.0
    %2003 = vmatprep.subr.mxu0 0.0
    %2004 = vmatpush2.msra.mxu0 0.0
    %2005 = vmatprep.subr.mxu0 0.0
    %2006 = vmatpush2.msra.mxu0 0.0
    %2007 = vmatprep.subr.mxu0 0.0
    %2008 = vmatpush2.msra.mxu0 0.0
    %2009 = vmatprep.subr.mxu0 0.0
    %2010 = vmatpush2.msra.mxu0 0.0
    %2011 = vmatprep.mubr.f32.mxu0 0.0
    %2012 = vmatmul.mubr.f32.gmra.mxu0 %v1945
    %v2013 = vpop.f32.mrf.mxu0
    %v2014 = vadd.f32 0.0, %v2013
    %v2015 = vpop.f32.mrf.mxu0
    %2016 = vdwg.mxu0
    %v2017 = vld [vmem:[#allocation14 + $0x10] sm:$0xff]
    %v2019 = vsel %vm406, %v2014, 0
    %2021 = vmatprep.subr.mxu0 0.0
    %2022 = vmatpush1.msra.mxu0 0.0
    %2023 = vmatprep.subr.mxu0 0.0
    %2024 = vmatpush1.msra.mxu0 0.0
    %2025 = vmatprep.subr.mxu0 0.0
    %2026 = vmatpush1.msra.mxu0 0.0
    %2027 = vmatprep.subr.mxu0 0.0
    %2028 = vmatpush1.msra.mxu0 0.0
    %2029 = vmatprep.subr.mxu0 0.0
    %2030 = vmatpush1.msra.mxu0 0.0
    %2031 = vmatprep.subr.mxu0 0.0
    %2032 = vmatpush1.msra.mxu0 0.0
    %2033 = vmatprep.subr.mxu0 0.0
    %2034 = vmatpush1.msra.mxu0 0.0
    %2035 = vmatprep.subr.mxu0 0.0
    %2036 = vmatpush1.msra.mxu0 0.0
    %2037 = vmatprep.subr.mxu0 0.0
    %2038 = vmatpush1.msra.mxu0 0.0
    %2039 = vmatprep.subr.mxu0 0.0
    %2040 = vmatpush1.msra.mxu0 0.0
    %2041 = vmatprep.subr.mxu0 0.0
    %2042 = vmatpush1.msra.mxu0 0.0
    %2043 = vmatprep.subr.mxu0 0.0
    %2044 = vmatpush1.msra.mxu0 0.0
    %2045 = vmatprep.subr.mxu0 0.0
    %2046 = vmatpush1.msra.mxu0 0.0
    %2047 = vmatprep.subr.mxu0 0.0
    %2048 = vmatpush1.msra.mxu0 0.0
    %2049 = vmatprep.subr.mxu0 0.0
    %2050 = vmatpush1.msra.mxu0 0.0
    %2051 = vmatprep.subr.mxu0 0.0
    %2052 = vmatpush1.msra.mxu0 %v2017
    %2053 = vmatprep.subr.mxu0 0.0
    %2054 = vmatpush2.msra.mxu0 0.0
    %2055 = vmatprep.subr.mxu0 0.0
    %2056 = vmatpush2.msra.mxu0 0.0
    %2057 = vmatprep.subr.mxu0 0.0
    %2058 = vmatpush2.msra.mxu0 0.0
    %2059 = vmatprep.subr.mxu0 0.0
    %2060 = vmatpush2.msra.mxu0 0.0
    %2061 = vmatprep.subr.mxu0 0.0
    %2062 = vmatpush2.msra.mxu0 0.0
    %2063 = vmatprep.subr.mxu0 0.0
    %2064 = vmatpush2.msra.mxu0 0.0
    %2065 = vmatprep.subr.mxu0 0.0
    %2066 = vmatpush2.msra.mxu0 0.0
    %2067 = vmatprep.subr.mxu0 0.0
    %2068 = vmatpush2.msra.mxu0 0.0
    %2069 = vmatprep.subr.mxu0 0.0
    %2070 = vmatpush2.msra.mxu0 0.0
    %2071 = vmatprep.subr.mxu0 0.0
    %2072 = vmatpush2.msra.mxu0 0.0
    %2073 = vmatprep.subr.mxu0 0.0
    %2074 = vmatpush2.msra.mxu0 0.0
    %2075 = vmatprep.subr.mxu0 0.0
    %2076 = vmatpush2.msra.mxu0 0.0
    %2077 = vmatprep.subr.mxu0 0.0
    %2078 = vmatpush2.msra.mxu0 0.0
    %2079 = vmatprep.subr.mxu0 0.0
    %2080 = vmatpush2.msra.mxu0 0.0
    %2081 = vmatprep.subr.mxu0 0.0
    %2082 = vmatpush2.msra.mxu0 0.0
    %2083 = vmatprep.subr.mxu0 0.0
    %2084 = vmatpush2.msra.mxu0 0.0
    %2085 = vmatprep.mubr.f32.mxu0 0.0
    %2086 = vmatmul.mubr.f32.gmra.mxu0 %v2019
    %v2087 = vpop.f32.mrf.mxu0
    %v2088 = vadd.f32 0.0, %v2087
    %v2089 = vpop.f32.mrf.mxu0
    %2090 = vdwg.mxu0
    %v2091 = vadd.f32 %v1848, %v2088
    %2092 = vrot.lane.b32.xlu0 %v227, 104
    %v2093 = vpop.permute.xlu0 %2092
    %2094 = vrot.lane.b32.xlu0 %v314, 104
    %v2095 = vpop.permute.xlu0 %2094
    %v2096 = vsel %vm406, %v2093, 0
    %v2098 = vsel %vm406, %v2095, 0
    %2100 = vmatprep.subr.mxu0 0.0
    %2101 = vmatpush1.xpose.msra.mxu0 0.0
    %2102 = vmatprep.subr.mxu0 0.0
    %2103 = vmatpush1.xpose.msra.mxu0 0.0
    %2104 = vmatprep.subr.mxu0 0.0
    %2105 = vmatpush1.xpose.msra.mxu0 0.0
    %2106 = vmatprep.subr.mxu0 0.0
    %2107 = vmatpush1.xpose.msra.mxu0 0.0
    %2108 = vmatprep.subr.mxu0 0.0
    %2109 = vmatpush1.xpose.msra.mxu0 0.0
    %2110 = vmatprep.subr.mxu0 0.0
    %2111 = vmatpush1.xpose.msra.mxu0 0.0
    %2112 = vmatprep.subr.mxu0 0.0
    %2113 = vmatpush1.xpose.msra.mxu0 0.0
    %2114 = vmatprep.subr.mxu0 0.0
    %2115 = vmatpush1.xpose.msra.mxu0 0.0
    %2116 = vmatprep.subr.mxu0 0.0
    %2117 = vmatpush1.xpose.msra.mxu0 0.0
    %2118 = vmatprep.subr.mxu0 0.0
    %2119 = vmatpush1.xpose.msra.mxu0 0.0
    %2120 = vmatprep.subr.mxu0 0.0
    %2121 = vmatpush1.xpose.msra.mxu0 0.0
    %2122 = vmatprep.subr.mxu0 0.0
    %2123 = vmatpush1.xpose.msra.mxu0 0.0
    %2124 = vmatprep.subr.mxu0 0.0
    %2125 = vmatpush1.xpose.msra.mxu0 0.0
    %2126 = vmatprep.subr.mxu0 0.0
    %2127 = vmatpush1.xpose.msra.mxu0 0.0
    %2128 = vmatprep.subr.mxu0 0.0
    %2129 = vmatpush1.xpose.msra.mxu0 0.0
    %2130 = vmatprep.subr.mxu0 0.0
    %2131 = vmatpush1.xpose.msra.mxu0 %v2098
    %2132 = vmatprep.subr.mxu0 0.0
    %2133 = vmatpush2.xpose.msra.mxu0 0.0
    %2134 = vmatprep.subr.mxu0 0.0
    %2135 = vmatpush2.xpose.msra.mxu0 0.0
    %2136 = vmatprep.subr.mxu0 0.0
    %2137 = vmatpush2.xpose.msra.mxu0 0.0
    %2138 = vmatprep.subr.mxu0 0.0
    %2139 = vmatpush2.xpose.msra.mxu0 0.0
    %2140 = vmatprep.subr.mxu0 0.0
    %2141 = vmatpush2.xpose.msra.mxu0 0.0
    %2142 = vmatprep.subr.mxu0 0.0
    %2143 = vmatpush2.xpose.msra.mxu0 0.0
    %2144 = vmatprep.subr.mxu0 0.0
    %2145 = vmatpush2.xpose.msra.mxu0 0.0
    %2146 = vmatprep.subr.mxu0 0.0
    %2147 = vmatpush2.xpose.msra.mxu0 0.0
    %2148 = vmatprep.subr.mxu0 0.0
    %2149 = vmatpush2.xpose.msra.mxu0 0.0
    %2150 = vmatprep.subr.mxu0 0.0
    %2151 = vmatpush2.xpose.msra.mxu0 0.0
    %2152 = vmatprep.subr.mxu0 0.0
    %2153 = vmatpush2.xpose.msra.mxu0 0.0
    %2154 = vmatprep.subr.mxu0 0.0
    %2155 = vmatpush2.xpose.msra.mxu0 0.0
    %2156 = vmatprep.subr.mxu0 0.0
    %2157 = vmatpush2.xpose.msra.mxu0 0.0
    %2158 = vmatprep.subr.mxu0 0.0
    %2159 = vmatpush2.xpose.msra.mxu0 0.0
    %2160 = vmatprep.subr.mxu0 0.0
    %2161 = vmatpush2.xpose.msra.mxu0 0.0
    %2162 = vmatprep.subr.mxu0 0.0
    %2163 = vmatpush2.xpose.msra.mxu0 0.0
    %2164 = vmatprep.mubr.f32.mxu0 0.0
    %2165 = vmatmul.mubr.f32.gmra.mxu0 %v2096
    %v2166 = vpop.f32.mrf.mxu0
    %v2167 = vadd.f32 %v1374, %v2166
    %v2168 = vpop.f32.mrf.mxu0
    %2169 = vdwg.mxu0
    %v2170 = vmul.f32 %v2167, 0.17677669
    %v2171 = vsel %vm406, %v2170, -inf
    %2172 = vmax.xlane.f32.xlu0 %v2171
    %v2173 = vpop.xlane.xlu0 %2172
    %v2174 = vsub.f32 %v2170, %v2173
    %v2175 = vmul.f32 %v2174, 1.442695
    %v2176 = vpow.pop %v2175
    %v2177 = vsel %vm406, %v2176, 0.0
    %2178 = vadd.xlane.f32.xlu0 %v2177
    %v2179 = vpop.xlane.xlu0 %2178
    %v2180 = vrcp.pop %v2179
    %v2181 = vmul.f32 %v2176, %v2180
    %2182 = vrot.lane.b32.xlu0 %v401, 104
    %v2183 = vpop.permute.xlu0 %2182
    %v2186 = vsel %vm406, %v2181, 0
    %2188 = vmatprep.subr.mxu0 0.0
    %2189 = vmatpush1.msra.mxu0 0.0
    %2190 = vmatprep.subr.mxu0 0.0
    %2191 = vmatpush1.msra.mxu0 0.0
    %2192 = vmatprep.subr.mxu0 0.0
    %2193 = vmatpush1.msra.mxu0 0.0
    %2194 = vmatprep.subr.mxu0 0.0
    %2195 = vmatpush1.msra.mxu0 0.0
    %2196 = vmatprep.subr.mxu0 0.0
    %2197 = vmatpush1.msra.mxu0 0.0
    %2198 = vmatprep.subr.mxu0 0.0
    %2199 = vmatpush1.msra.mxu0 0.0
    %2200 = vmatprep.subr.mxu0 0.0
    %2201 = vmatpush1.msra.mxu0 0.0
    %2202 = vmatprep.subr.mxu0 0.0
    %2203 = vmatpush1.msra.mxu0 0.0
    %2204 = vmatprep.subr.mxu0 0.0
    %2205 = vmatpush1.msra.mxu0 0.0
    %2206 = vmatprep.subr.mxu0 0.0
    %2207 = vmatpush1.msra.mxu0 0.0
    %2208 = vmatprep.subr.mxu0 0.0
    %2209 = vmatpush1.msra.mxu0 0.0
    %2210 = vmatprep.subr.mxu0 0.0
    %2211 = vmatpush1.msra.mxu0 0.0
    %2212 = vmatprep.subr.mxu0 0.0
    %2213 = vmatpush1.msra.mxu0 0.0
    %2214 = vmatprep.subr.mxu0 0.0
    %2215 = vmatpush1.msra.mxu0 0.0
    %2216 = vmatprep.subr.mxu0 0.0
    %2217 = vmatpush1.msra.mxu0 0.0
    %2218 = vmatprep.subr.mxu0 0.0
    %2219 = vmatpush1.msra.mxu0 %v2183
    %2220 = vmatprep.subr.mxu0 0.0
    %2221 = vmatpush2.msra.mxu0 0.0
    %2222 = vmatprep.subr.mxu0 0.0
    %2223 = vmatpush2.msra.mxu0 0.0
    %2224 = vmatprep.subr.mxu0 0.0
    %2225 = vmatpush2.msra.mxu0 0.0
    %2226 = vmatprep.subr.mxu0 0.0
    %2227 = vmatpush2.msra.mxu0 0.0
    %2228 = vmatprep.subr.mxu0 0.0
    %2229 = vmatpush2.msra.mxu0 0.0
    %2230 = vmatprep.subr.mxu0 0.0
    %2231 = vmatpush2.msra.mxu0 0.0
    %2232 = vmatprep.subr.mxu0 0.0
    %2233 = vmatpush2.msra.mxu0 0.0
    %2234 = vmatprep.subr.mxu0 0.0
    %2235 = vmatpush2.msra.mxu0 0.0
    %2236 = vmatprep.subr.mxu0 0.0
    %2237 = vmatpush2.msra.mxu0 0.0
    %2238 = vmatprep.subr.mxu0 0.0
    %2239 = vmatpush2.msra.mxu0 0.0
    %2240 = vmatprep.subr.mxu0 0.0
    %2241 = vmatpush2.msra.mxu0 0.0
    %2242 = vmatprep.subr.mxu0 0.0
    %2243 = vmatpush2.msra.mxu0 0.0
    %2244 = vmatprep.subr.mxu0 0.0
    %2245 = vmatpush2.msra.mxu0 0.0
    %2246 = vmatprep.subr.mxu0 0.0
    %2247 = vmatpush2.msra.mxu0 0.0
    %2248 = vmatprep.subr.mxu0 0.0
    %2249 = vmatpush2.msra.mxu0 0.0
    %2250 = vmatprep.subr.mxu0 0.0
    %2251 = vmatpush2.msra.mxu0 0.0
    %2252 = vmatprep.mubr.f32.mxu0 0.0
    %2253 = vmatmul.mubr.f32.gmra.mxu0 %v2186
    %v2254 = vpop.f32.mrf.mxu0
    %v2255 = vadd.f32 0.0, %v2254
    %v2256 = vpop.f32.mrf.mxu0
    %2257 = vdwg.mxu0
    %v2258 = vld [vmem:[#allocation14 + $0x18] sm:$0xff]
    %v2260 = vsel %vm406, %v2255, 0
    %2262 = vmatprep.subr.mxu0 0.0
    %2263 = vmatpush1.msra.mxu0 0.0
    %2264 = vmatprep.subr.mxu0 0.0
    %2265 = vmatpush1.msra.mxu0 0.0
    %2266 = vmatprep.subr.mxu0 0.0
    %2267 = vmatpush1.msra.mxu0 0.0
    %2268 = vmatprep.subr.mxu0 0.0
    %2269 = vmatpush1.msra.mxu0 0.0
    %2270 = vmatprep.subr.mxu0 0.0
    %2271 = vmatpush1.msra.mxu0 0.0
    %2272 = vmatprep.subr.mxu0 0.0
    %2273 = vmatpush1.msra.mxu0 0.0
    %2274 = vmatprep.subr.mxu0 0.0
    %2275 = vmatpush1.msra.mxu0 0.0
    %2276 = vmatprep.subr.mxu0 0.0
    %2277 = vmatpush1.msra.mxu0 0.0
    %2278 = vmatprep.subr.mxu0 0.0
    %2279 = vmatpush1.msra.mxu0 0.0
    %2280 = vmatprep.subr.mxu0 0.0
    %2281 = vmatpush1.msra.mxu0 0.0
    %2282 = vmatprep.subr.mxu0 0.0
    %2283 = vmatpush1.msra.mxu0 0.0
    %2284 = vmatprep.subr.mxu0 0.0
    %2285 = vmatpush1.msra.mxu0 0.0
    %2286 = vmatprep.subr.mxu0 0.0
    %2287 = vmatpush1.msra.mxu0 0.0
    %2288 = vmatprep.subr.mxu0 0.0
    %2289 = vmatpush1.msra.mxu0 0.0
    %2290 = vmatprep.subr.mxu0 0.0
    %2291 = vmatpush1.msra.mxu0 0.0
    %2292 = vmatprep.subr.mxu0 0.0
    %2293 = vmatpush1.msra.mxu0 %v2258
    %2294 = vmatprep.subr.mxu0 0.0
    %2295 = vmatpush2.msra.mxu0 0.0
    %2296 = vmatprep.subr.mxu0 0.0
    %2297 = vmatpush2.msra.mxu0 0.0
    %2298 = vmatprep.subr.mxu0 0.0
    %2299 = vmatpush2.msra.mxu0 0.0
    %2300 = vmatprep.subr.mxu0 0.0
    %2301 = vmatpush2.msra.mxu0 0.0
    %2302 = vmatprep.subr.mxu0 0.0
    %2303 = vmatpush2.msra.mxu0 0.0
    %2304 = vmatprep.subr.mxu0 0.0
    %2305 = vmatpush2.msra.mxu0 0.0
    %2306 = vmatprep.subr.mxu0 0.0
    %2307 = vmatpush2.msra.mxu0 0.0
    %2308 = vmatprep.subr.mxu0 0.0
    %2309 = vmatpush2.msra.mxu0 0.0
    %2310 = vmatprep.subr.mxu0 0.0
    %2311 = vmatpush2.msra.mxu0 0.0
    %2312 = vmatprep.subr.mxu0 0.0
    %2313 = vmatpush2.msra.mxu0 0.0
    %2314 = vmatprep.subr.mxu0 0.0
    %2315 = vmatpush2.msra.mxu0 0.0
    %2316 = vmatprep.subr.mxu0 0.0
    %2317 = vmatpush2.msra.mxu0 0.0
    %2318 = vmatprep.subr.mxu0 0.0
    %2319 = vmatpush2.msra.mxu0 0.0
    %2320 = vmatprep.subr.mxu0 0.0
    %2321 = vmatpush2.msra.mxu0 0.0
    %2322 = vmatprep.subr.mxu0 0.0
    %2323 = vmatpush2.msra.mxu0 0.0
    %2324 = vmatprep.subr.mxu0 0.0
    %2325 = vmatpush2.msra.mxu0 0.0
    %2326 = vmatprep.mubr.f32.mxu0 0.0
    %2327 = vmatmul.mubr.f32.gmra.mxu0 %v2260
    %v2328 = vpop.f32.mrf.mxu0
    %v2329 = vadd.f32 0.0, %v2328
    %v2330 = vpop.f32.mrf.mxu0
    %2331 = vdwg.mxu0
    %v2332 = vadd.f32 %v2091, %v2329
    %v2333 = vadd.f32 %v2332, %v1369
    %2334 = vst.msk [vmem:[#allocation16 + $0x8] sm:$0xff] %vm148, %v2333
    // Predicated region
    $region70: #{tpu_custom_call.1} parent=1 // pred_check
      _
    $region71: #{tpu_custom_call.1} parent=1 // pred_check_branch
      %2336 = sbr.rel (0) target = $region73
    $region72: #{tpu_custom_call.1} parent=1 // pred_region
      %s2338 = ssub.s32 256, 256
      %2339 = vsyncadd [#allocation4], %s2338
      %s2340 = sshll.u32 [#allocation16], 4
      %s2341 = int_to_ptr.vmem [resolvable:$true] %s2340
      %2346 = dma.vmem_to_hbm [thread:$0]  %s2341, 256, %s9, [#allocation4], 128, 128, 8
    $region73: #{tpu_custom_call.1} parent=1 // pred_fallthru
      _
    // Predicated region
    $region74: #{tpu_custom_call.1} parent=1 // pred_check
      _
    $region75: #{tpu_custom_call.1} parent=1 // pred_check_branch
      %2348 = sbr.rel (0) target = $region77
    $region76: #{tpu_custom_call.1} parent=1 // pred_region
      %2349 = dma.done [#allocation4], 256
    $region77: #{tpu_custom_call.1} parent=1 // pred_fallthru
      _
    %2350 = vsyncpa [#allocation3], 1
    %2351 = vsyncpa [#allocation6], 1
    %2352 = vsyncpa [#allocation9], 1
    %2353 = vsyncpa [#allocation12], 1
    %2354 = vsyncpa [#allocation15], 1
    %2355 = vsyncpa [#allocation4], 1

</llo_original>
